<compile_context>
chip_gen: v6e
topology: v6e:2x2x1
jax: 0.10.0
libtpu: 0.0.40
codegen_flags: <defaults>
</compile_context>

<pallas_src>
import jax
import jax.numpy as jnp
from jax.experimental import pallas as pl
from jax.experimental.pallas import tpu as pltpu


def _h_swish(v):
    return v * (jnp.clip(v + 3.0, 0.0, 6.0) / 6.0)


def _h_sigmoid(v):
    return jnp.clip(v + 3.0, 0.0, 6.0) / 6.0


def locality_feed_forward(x_nchw, p):
    """LocalityFeedForward forward pass as a single Pallas TPU kernel."""
    B, C, H, W = x_nchw.shape
    N = H * W
    HID = p['w1'].shape[1]
    RED = p['w_fc1'].shape[1]
    BC, BH = B * C, B * HID
    assert N >= BH + 2, "aux pack assumes N >= B*HID + 2"

    # NCHW -> (B*C, H*W): a free, contiguous reshape (batch folded on sublanes).
    x = x_nchw.reshape(BC, N).astype(jnp.float32)

    # ---- host-side parameter packing (3 lane-friendly inputs total) ---------
    def tile_b(a):                       # (rows, k) -> (B*rows, k), batch-major
        return jnp.tile(a, (B, 1))

    def block_diag(blk):                 # (r, c) -> (B*r, B*c) block-diagonal
        r, c = blk.shape
        out = jnp.zeros((B * r, B * c), jnp.float32)
        for b in range(B):
            out = out.at[b * r:(b + 1) * r, b * c:(b + 1) * c].set(blk)
        return out

    w_cov1_bd = block_diag(p['w1'].T)                           # (BH, BC)
    dww_t = p['dww'][:2].reshape(2 * 9, HID).T                  # (HID, 18)
    colsH = jnp.stack([p['s1'][0], p['b1'][0],
                       p['dws'][0], p['dwb'][0],
                       p['dws'][1], p['dwb'][1],
                       p['b_fc2'][0]], axis=1)                  # (HID, 7)
    packH = jnp.concatenate(
        [w_cov1_bd, tile_b(dww_t), tile_b(colsH),
         tile_b(p['w_fc1']), tile_b(p['w_fc2'].T)], axis=1)     # (BH, NCOLH)

    # column offsets inside packH
    O_W1 = 0
    O_DW = O_W1 + BC
    O_S1 = O_DW + 18
    O_B1 = O_S1 + 1
    O_DWS0 = O_B1 + 1
    O_DWB0 = O_DWS0 + 1
    O_DWS1 = O_DWB0 + 1
    O_DWB1 = O_DWS1 + 1
    O_BFC2 = O_DWB1 + 1
    O_WFC1 = O_BFC2 + 1
    O_WFC2 = O_WFC1 + RED
    NCOLH = O_WFC2 + RED
    assert packH.shape == (BH, NCOLH)

    # ---- precomputed boundary masks + static lane shifts (built once) -------
    idx = jnp.arange(N, dtype=jnp.int32)
    row = idx // W
    col = idx - row * W
    mask_list = []
    shifts = []
    for kh in range(3):
        for kw in range(3):
            dh, dw = kh - 1, kw - 1
            m = ((row + dh >= 0) & (row + dh < H) &
                 (col + dw >= 0) & (col + dw < W))
            mask_list.append(m)
            shifts.append((-(dh * W + dw)) % N)   # result[n] = v[n + dh*W + dw]
    masks = jnp.stack(mask_list, axis=0).astype(jnp.float32)    # (9, N)

    # packA: rows 0..BC-1 = [w_covF block-diag | sF | bF], rows BC..BC+8 = masks,
    # row BC+9 (first RED lanes) = b_fc1.
    w_covF_bd = block_diag(p['wF'].T)                           # (BC, BH)
    sF_col = jnp.tile(p['sF'].reshape(C, 1), (B, 1))            # (BC, 1)
    bF_col = jnp.tile(p['bF'].reshape(C, 1), (B, 1))            # (BC, 1)
    NAUX = BC + 9 + 1
    packA = jnp.zeros((NAUX, N), jnp.float32)
    packA = packA.at[0:BC, 0:BH].set(w_covF_bd)
    packA = packA.at[0:BC, BH].set(sF_col[:, 0])
    packA = packA.at[0:BC, BH + 1].set(bF_col[:, 0])
    packA = packA.at[BC:BC + 9, :].set(masks)
    packA = packA.at[BC + 9, 0:RED].set(p['b_fc1'][0])

    def kernel(x_ref, pH_ref, pA_ref, o_ref):
        x_in = x_ref[...]                                       # (BC, N)
        pH = pH_ref[...]                                        # (BH, NCOLH)
        pA = pA_ref[...]                                        # (NAUX, N)

        w_cov1 = pH[:, O_W1:O_W1 + BC]                          # (BH, BC)
        s1 = pH[:, O_S1:O_S1 + 1]
        b1 = pH[:, O_B1:O_B1 + 1]
        dws = (pH[:, O_DWS0:O_DWS0 + 1], pH[:, O_DWS1:O_DWS1 + 1])
        dwb = (pH[:, O_DWB0:O_DWB0 + 1], pH[:, O_DWB1:O_DWB1 + 1])
        b_fc2 = pH[:, O_BFC2:O_BFC2 + 1]
        w_fc1 = pH[:, O_WFC1:O_WFC1 + RED]                      # (BH, RED)
        w_fc2 = pH[:, O_WFC2:O_WFC2 + RED]                      # (BH, RED)

        w_covF = pA[0:BC, 0:BH]                                 # (BC, BH)
        sF = pA[0:BC, BH:BH + 1]
        bF = pA[0:BC, BH + 1:BH + 2]
        b_fc1 = pA[BC + 9:BC + 10, 0:RED]                       # (1, RED)

        def tap_planes(si):
            # masked tap-weight planes, built once per si and reused by every
            # dwconv call of that si (review: hoist out of the tap loop).
            planes = []
            for t in range(9):
                w_col = pH[:, O_DW + si * 9 + t:O_DW + si * 9 + t + 1]  # (BH,1)
                if t == 4:
                    planes.append(w_col)                        # centre: unmasked
                else:
                    m = pA[BC + t:BC + t + 1, :]                # (1, N) boundary
                    planes.append(w_col * m)                    # (BH, N)
            return planes

        def dwconv(v, planes):
            # depthwise 3x3, stride 1, "same" zero padding, bias-free:
            # XLU lane rolls + pre-masked weight planes.
            out = v * planes[4]                                 # centre tap
            for t in range(9):
                if t == 4:
                    continue
                out = out + pltpu.roll(v, shifts[t], axis=1) * planes[t]
            return out

        # ---- cov1: 1x1 conv (C -> HID, block-diag over batch) + BN + h_swish
        h = jnp.dot(w_cov1, x_in, preferred_element_type=jnp.float32)   # (BH, N)
        h = _h_swish(h * s1 + b1)

        # ---- HireDP (reproduces the layers[i:i+3] slicing quirk exactly) ----
        planes0 = tap_planes(0)
        x1 = _h_swish(dwconv(h, planes0) * dws[0] + dwb[0])     # conv0, bn0, act
        hsum = x1
        planes1 = tap_planes(1)                                 # shared by x2 & x3
        x2 = dwconv(_h_swish(x1 * dws[0] + dwb[0]), planes1)    # bn0, act, conv1
        hsum = hsum + x2
        x3 = dwconv(_h_swish(x2), planes1) * dws[1] + dwb[1]    # act, conv1, bn1
        hsum = hsum + x3                                        # (BH, N)

        # ---- SE layer (VPU/XLU only, per-batch segmented reduces) ----
        pooled = jnp.sum(hsum, axis=1, keepdims=True) * (1.0 / N)       # (BH,1)
        prod = w_fc1 * pooled                                           # (BH,RED)
        se_cols = []
        for b in range(B):                                       # static tiny loop
            lo, hi = b * HID, (b + 1) * HID
            z = jnp.maximum(
                jnp.sum(prod[lo:hi, :], axis=0, keepdims=True) + b_fc1, 0.0)
            se_cols.append(_h_sigmoid(
                jnp.sum(w_fc2[lo:hi, :] * z, axis=1, keepdims=True)
                + b_fc2[lo:hi, :]))                                      # (HID,1)
        se = jnp.concatenate(se_cols, axis=0)                            # (BH,1)
        hsum = hsum * se

        # ---- covF: 1x1 conv (HID -> C) + folded BN + residual (lane-dense) --
        o = jnp.dot(w_covF, hsum, preferred_element_type=jnp.float32)    # (BC,N)
        o_ref[...] = (x_in + o * sF + bF).astype(o_ref.dtype)

    out = pl.pallas_call(
        kernel,
        out_shape=jax.ShapeDtypeStruct((BC, N), jnp.float32),
        grid=(1,),
        in_specs=[
            pl.BlockSpec((BC, N), lambda i: (0, 0)),
            pl.BlockSpec((BH, NCOLH), lambda i: (0, 0)),
            pl.BlockSpec((NAUX, N), lambda i: (0, 0)),
        ],
        out_specs=pl.BlockSpec((BC, N), lambda i: (0, 0)),
        compiler_params=pltpu.CompilerParams(
            dimension_semantics=("arbitrary",)),
    )(x, packH, packA)

    return out.reshape(B, C, H, W)


def make_params(key, in_dim=4, expand_ratio=4.0, reduction=4):
    hid = int(in_dim * expand_ratio)
    red = hid // reduction
    keys = iter(jax.random.split(key, 32))   # 27 keys actually consumed

    def nk():
        return next(keys)

    def bn_fold(dim):
        gamma = 1.0 + 0.1 * jax.random.normal(nk(), (dim,), jnp.float32)
        beta = 0.1 * jax.random.normal(nk(), (dim,), jnp.float32)
        mean = 0.05 * jax.random.normal(nk(), (dim,), jnp.float32)
        var = 1.0 + 0.1 * jax.random.uniform(nk(), (dim,), jnp.float32)
        scale = gamma / jnp.sqrt(var + 1e-5)
        bias = beta - mean * scale
        return scale, bias

    p = {}
    p['w1'] = 0.3 * jax.random.normal(nk(), (in_dim, hid), jnp.float32)
    s1, b1 = bn_fold(hid)
    p['s1'], p['b1'] = s1.reshape(1, hid), b1.reshape(1, hid)

    p['dww'] = 0.3 * jax.random.normal(nk(), (3, 3, 3, hid), jnp.float32)
    dws, dwb = [], []
    for _ in range(3):
        s, b = bn_fold(hid)
        dws.append(s)
        dwb.append(b)
    p['dws'] = jnp.stack(dws)                                    # (3, hid)
    p['dwb'] = jnp.stack(dwb)

    p['w_fc1'] = 0.3 * jax.random.normal(nk(), (hid, red), jnp.float32)
    p['b_fc1'] = 0.1 * jax.random.normal(nk(), (1, red), jnp.float32)
    p['w_fc2'] = 0.3 * jax.random.normal(nk(), (red, hid), jnp.float32)
    p['b_fc2'] = 0.1 * jax.random.normal(nk(), (1, hid), jnp.float32)

    p['wF'] = 0.3 * jax.random.normal(nk(), (hid, in_dim), jnp.float32)
    sF, bF = bn_fold(in_dim)
    p['sF'], p['bF'] = sF.reshape(1, in_dim), bF.reshape(1, in_dim)
    return p


def reference(x_nchw, p):
    """Plain-JAX reference with identical semantics (for validation)."""
    hp = jax.lax.Precision.HIGHEST
    x = jnp.transpose(x_nchw, (0, 2, 3, 1)).astype(jnp.float32)
    B, H, W, C = x.shape
    HID = p['w1'].shape[1]
    h = jnp.einsum('bhwc,cd->bhwd', x, p['w1'], precision=hp)
    h = h * p['s1'].reshape(1, 1, 1, HID) + p['b1'].reshape(1, 1, 1, HID)
    h = _h_swish(h)

    def dwconv(v, si):
        vp = jnp.pad(v, ((0, 0), (1, 1), (1, 1), (0, 0)))
        out = jnp.zeros_like(v)
        for kh in range(3):
            for kw in range(3):
                out = out + vp[:, kh:kh + H, kw:kw + W, :] * p['dww'][si, kh, kw, :]
        return out

    def bn(v, si):
        return v * p['dws'][si] + p['dwb'][si]

    x1 = _h_swish(bn(dwconv(h, 0), 0))
    x2 = dwconv(_h_swish(bn(x1, 0)), 1)
    x3 = bn(dwconv(_h_swish(x2), 1), 1)
    h = x1 + x2 + x3

    y = jnp.mean(h, axis=(1, 2))
    y = jnp.maximum(jnp.matmul(y, p['w_fc1'], precision=hp) + p['b_fc1'], 0.0)
    y = _h_sigmoid(jnp.matmul(y, p['w_fc2'], precision=hp) + p['b_fc2'])
    h = h * y[:, None, None, :]

    o = jnp.einsum('bhwd,dc->bhwc', h, p['wF'], precision=hp)
    o = o * p['sF'].reshape(1, 1, 1, C) + p['bF'].reshape(1, 1, 1, C)
    return jnp.transpose(x + o, (0, 3, 1, 2))


if __name__ == "__main__":
    key = jax.random.PRNGKey(0)
    kx, kp = jax.random.split(key)
    B, C, H, W = 2, 4, 16, 16
    x = jax.random.normal(kx, (B, C, H, W), jnp.float32)
    params = make_params(kp, in_dim=C, expand_ratio=4.0, reduction=4)

    lff = jax.jit(locality_feed_forward)
    out = jax.block_until_ready(lff(x, params))
    assert out.shape == (B, C, H, W)

    ref = reference(x, params)
    max_err = float(jnp.max(jnp.abs(out - ref)))
    assert jnp.allclose(out, ref, atol=2e-3, rtol=2e-3), f"max abs err {max_err}"
    print("KERNEL_OK")
</pallas_src>

<mosaic_0001>
module attributes {stable_mosaic.version = 11 : i64} {
  func.func @kernel(%arg0: i32, %arg1: memref<8x256xf32, #tpu.memory_space<vmem>>, %arg2: memref<32x41xf32, #tpu.memory_space<vmem>>, %arg3: memref<18x256xf32, #tpu.memory_space<vmem>>, %arg4: memref<8x256xf32, #tpu.memory_space<vmem>>) attributes {dimension_semantics = [#tpu.dimension_semantics<arbitrary>], iteration_bounds = array<i64: 1>, scalar_prefetch = 0 : i64, scratch_operands = 0 : i64, tpu.core_type = #tpu.core_type<tc>, window_params = [{pipeline_mode = #tpu.pipeline_mode<synchronous>, transform_indices = @transform_0, window_bounds = array<i64: 8, 256>}, {pipeline_mode = #tpu.pipeline_mode<synchronous>, transform_indices = @transform_1, window_bounds = array<i64: 32, 41>}, {pipeline_mode = #tpu.pipeline_mode<synchronous>, transform_indices = @transform_2, window_bounds = array<i64: 18, 256>}, {pipeline_mode = #tpu.pipeline_mode<synchronous>, transform_indices = @transform_3, window_bounds = array<i64: 8, 256>}]} {
    %c0 = arith.constant 0 : index
    %c0_0 = arith.constant 0 : index
    %0 = vector.load %arg1[%c0, %c0_0] : memref<8x256xf32, #tpu.memory_space<vmem>>, vector<8x256xf32>
    %c0_1 = arith.constant 0 : index
    %c0_2 = arith.constant 0 : index
    %1 = vector.load %arg2[%c0_1, %c0_2] : memref<32x41xf32, #tpu.memory_space<vmem>>, vector<32x41xf32>
    %c0_3 = arith.constant 0 : index
    %c0_4 = arith.constant 0 : index
    %2 = vector.load %arg3[%c0_3, %c0_4] : memref<18x256xf32, #tpu.memory_space<vmem>>, vector<18x256xf32>
    %3 = vector.extract_strided_slice %1 {offsets = [0, 0], sizes = [32, 8], strides = [1, 1]} : vector<32x41xf32> to vector<32x8xf32>
    %4 = vector.extract_strided_slice %1 {offsets = [0, 26], sizes = [32, 1], strides = [1, 1]} : vector<32x41xf32> to vector<32x1xf32>
    %5 = vector.extract_strided_slice %1 {offsets = [0, 27], sizes = [32, 1], strides = [1, 1]} : vector<32x41xf32> to vector<32x1xf32>
    %6 = vector.extract_strided_slice %1 {offsets = [0, 28], sizes = [32, 1], strides = [1, 1]} : vector<32x41xf32> to vector<32x1xf32>
    %7 = vector.extract_strided_slice %1 {offsets = [0, 30], sizes = [32, 1], strides = [1, 1]} : vector<32x41xf32> to vector<32x1xf32>
    %8 = vector.extract_strided_slice %1 {offsets = [0, 29], sizes = [32, 1], strides = [1, 1]} : vector<32x41xf32> to vector<32x1xf32>
    %9 = vector.extract_strided_slice %1 {offsets = [0, 31], sizes = [32, 1], strides = [1, 1]} : vector<32x41xf32> to vector<32x1xf32>
    %10 = vector.extract_strided_slice %1 {offsets = [0, 32], sizes = [32, 1], strides = [1, 1]} : vector<32x41xf32> to vector<32x1xf32>
    %11 = vector.extract_strided_slice %1 {offsets = [0, 33], sizes = [32, 4], strides = [1, 1]} : vector<32x41xf32> to vector<32x4xf32>
    %12 = vector.extract_strided_slice %1 {offsets = [0, 37], sizes = [32, 4], strides = [1, 1]} : vector<32x41xf32> to vector<32x4xf32>
    %13 = vector.extract_strided_slice %2 {offsets = [0, 0], sizes = [8, 32], strides = [1, 1]} : vector<18x256xf32> to vector<8x32xf32>
    %14 = vector.extract_strided_slice %2 {offsets = [0, 32], sizes = [8, 1], strides = [1, 1]} : vector<18x256xf32> to vector<8x1xf32>
    %15 = vector.extract_strided_slice %2 {offsets = [0, 33], sizes = [8, 1], strides = [1, 1]} : vector<18x256xf32> to vector<8x1xf32>
    %16 = vector.extract_strided_slice %2 {offsets = [17, 0], sizes = [1, 4], strides = [1, 1]} : vector<18x256xf32> to vector<1x4xf32>
    %cst = arith.constant dense<0.000000e+00> : vector<32x256xf32>
    %17 = tpu.matmul %3, %0, %cst {dimension_numbers = #tpu.dot_dimension_numbers<[1], [0], [0], [1], [0, 0, 1, 1], [], []>} : vector<32x8xf32>, vector<8x256xf32>, vector<32x256xf32> -> vector<32x256xf32>
    %18 = vector.broadcast %4 : vector<32x1xf32> to vector<32x256xf32>
    %19 = arith.mulf %17, %18 : vector<32x256xf32>
    %20 = vector.broadcast %5 : vector<32x1xf32> to vector<32x256xf32>
    %21 = arith.addf %19, %20 : vector<32x256xf32>
    %cst_5 = arith.constant 3.000000e+00 : f32
    %22 = vector.broadcast %cst_5 : f32 to vector<32x256xf32>
    %23 = arith.addf %21, %22 : vector<32x256xf32>
    %cst_6 = arith.constant 0.000000e+00 : f32
    %cst_7 = arith.constant 6.000000e+00 : f32
    %24 = vector.broadcast %cst_6 : f32 to vector<32x256xf32>
    %25 = arith.maximumf %24, %23 : vector<32x256xf32>
    %26 = vector.broadcast %cst_7 : f32 to vector<32x256xf32>
    %27 = arith.minimumf %26, %25 : vector<32x256xf32>
    %cst_8 = arith.constant 6.000000e+00 : f32
    %28 = vector.broadcast %cst_8 : f32 to vector<32x256xf32>
    %29 = arith.divf %27, %28 : vector<32x256xf32>
    %30 = arith.mulf %21, %29 : vector<32x256xf32>
    %31 = vector.extract_strided_slice %1 {offsets = [0, 8], sizes = [32, 1], strides = [1, 1]} : vector<32x41xf32> to vector<32x1xf32>
    %32 = vector.extract_strided_slice %2 {offsets = [8, 0], sizes = [1, 256], strides = [1, 1]} : vector<18x256xf32> to vector<1x256xf32>
    %33 = vector.broadcast %31 : vector<32x1xf32> to vector<32x256xf32>
    %34 = vector.broadcast %32 : vector<1x256xf32> to vector<32x256xf32>
    %35 = arith.mulf %33, %34 : vector<32x256xf32>
    %36 = vector.extract_strided_slice %1 {offsets = [0, 9], sizes = [32, 1], strides = [1, 1]} : vector<32x41xf32> to vector<32x1xf32>
    %37 = vector.extract_strided_slice %2 {offsets = [9, 0], sizes = [1, 256], strides = [1, 1]} : vector<18x256xf32> to vector<1x256xf32>
    %38 = vector.broadcast %36 : vector<32x1xf32> to vector<32x256xf32>
    %39 = vector.broadcast %37 : vector<1x256xf32> to vector<32x256xf32>
    %40 = arith.mulf %38, %39 : vector<32x256xf32>
    %41 = vector.extract_strided_slice %1 {offsets = [0, 10], sizes = [32, 1], strides = [1, 1]} : vector<32x41xf32> to vector<32x1xf32>
    %42 = vector.extract_strided_slice %2 {offsets = [10, 0], sizes = [1, 256], strides = [1, 1]} : vector<18x256xf32> to vector<1x256xf32>
    %43 = vector.broadcast %41 : vector<32x1xf32> to vector<32x256xf32>
    %44 = vector.broadcast %42 : vector<1x256xf32> to vector<32x256xf32>
    %45 = arith.mulf %43, %44 : vector<32x256xf32>
    %46 = vector.extract_strided_slice %1 {offsets = [0, 11], sizes = [32, 1], strides = [1, 1]} : vector<32x41xf32> to vector<32x1xf32>
    %47 = vector.extract_strided_slice %2 {offsets = [11, 0], sizes = [1, 256], strides = [1, 1]} : vector<18x256xf32> to vector<1x256xf32>
    %48 = vector.broadcast %46 : vector<32x1xf32> to vector<32x256xf32>
    %49 = vector.broadcast %47 : vector<1x256xf32> to vector<32x256xf32>
    %50 = arith.mulf %48, %49 : vector<32x256xf32>
    %51 = vector.extract_strided_slice %1 {offsets = [0, 12], sizes = [32, 1], strides = [1, 1]} : vector<32x41xf32> to vector<32x1xf32>
    %52 = vector.extract_strided_slice %1 {offsets = [0, 13], sizes = [32, 1], strides = [1, 1]} : vector<32x41xf32> to vector<32x1xf32>
    %53 = vector.extract_strided_slice %2 {offsets = [13, 0], sizes = [1, 256], strides = [1, 1]} : vector<18x256xf32> to vector<1x256xf32>
    %54 = vector.broadcast %52 : vector<32x1xf32> to vector<32x256xf32>
    %55 = vector.broadcast %53 : vector<1x256xf32> to vector<32x256xf32>
    %56 = arith.mulf %54, %55 : vector<32x256xf32>
    %57 = vector.extract_strided_slice %1 {offsets = [0, 14], sizes = [32, 1], strides = [1, 1]} : vector<32x41xf32> to vector<32x1xf32>
    %58 = vector.extract_strided_slice %2 {offsets = [14, 0], sizes = [1, 256], strides = [1, 1]} : vector<18x256xf32> to vector<1x256xf32>
    %59 = vector.broadcast %57 : vector<32x1xf32> to vector<32x256xf32>
    %60 = vector.broadcast %58 : vector<1x256xf32> to vector<32x256xf32>
    %61 = arith.mulf %59, %60 : vector<32x256xf32>
    %62 = vector.extract_strided_slice %1 {offsets = [0, 15], sizes = [32, 1], strides = [1, 1]} : vector<32x41xf32> to vector<32x1xf32>
    %63 = vector.extract_strided_slice %2 {offsets = [15, 0], sizes = [1, 256], strides = [1, 1]} : vector<18x256xf32> to vector<1x256xf32>
    %64 = vector.broadcast %62 : vector<32x1xf32> to vector<32x256xf32>
    %65 = vector.broadcast %63 : vector<1x256xf32> to vector<32x256xf32>
    %66 = arith.mulf %64, %65 : vector<32x256xf32>
    %67 = vector.extract_strided_slice %1 {offsets = [0, 16], sizes = [32, 1], strides = [1, 1]} : vector<32x41xf32> to vector<32x1xf32>
    %68 = vector.extract_strided_slice %2 {offsets = [16, 0], sizes = [1, 256], strides = [1, 1]} : vector<18x256xf32> to vector<1x256xf32>
    %69 = vector.broadcast %67 : vector<32x1xf32> to vector<32x256xf32>
    %70 = vector.broadcast %68 : vector<1x256xf32> to vector<32x256xf32>
    %71 = arith.mulf %69, %70 : vector<32x256xf32>
    %72 = vector.broadcast %51 : vector<32x1xf32> to vector<32x256xf32>
    %73 = arith.mulf %30, %72 : vector<32x256xf32>
    %c17_i32 = arith.constant 17 : i32
    %74 = tpu.dynamic_rotate %30 by %c17_i32 dim 1 : vector<32x256xf32>, i32 -> vector<32x256xf32>
    %75 = arith.mulf %74, %35 : vector<32x256xf32>
    %76 = arith.addf %73, %75 : vector<32x256xf32>
    %c16_i32 = arith.constant 16 : i32
    %77 = tpu.dynamic_rotate %30 by %c16_i32 dim 1 : vector<32x256xf32>, i32 -> vector<32x256xf32>
    %78 = arith.mulf %77, %40 : vector<32x256xf32>
    %79 = arith.addf %76, %78 : vector<32x256xf32>
    %c15_i32 = arith.constant 15 : i32
    %80 = tpu.dynamic_rotate %30 by %c15_i32 dim 1 : vector<32x256xf32>, i32 -> vector<32x256xf32>
    %81 = arith.mulf %80, %45 : vector<32x256xf32>
    %82 = arith.addf %79, %81 : vector<32x256xf32>
    %c1_i32 = arith.constant 1 : i32
    %83 = tpu.dynamic_rotate %30 by %c1_i32 dim 1 : vector<32x256xf32>, i32 -> vector<32x256xf32>
    %84 = arith.mulf %83, %50 : vector<32x256xf32>
    %85 = arith.addf %82, %84 : vector<32x256xf32>
    %c255_i32 = arith.constant 255 : i32
    %86 = tpu.dynamic_rotate %30 by %c255_i32 dim 1 : vector<32x256xf32>, i32 -> vector<32x256xf32>
    %87 = arith.mulf %86, %56 : vector<32x256xf32>
    %88 = arith.addf %85, %87 : vector<32x256xf32>
    %c241_i32 = arith.constant 241 : i32
    %89 = tpu.dynamic_rotate %30 by %c241_i32 dim 1 : vector<32x256xf32>, i32 -> vector<32x256xf32>
    %90 = arith.mulf %89, %61 : vector<32x256xf32>
    %91 = arith.addf %88, %90 : vector<32x256xf32>
    %c240_i32 = arith.constant 240 : i32
    %92 = tpu.dynamic_rotate %30 by %c240_i32 dim 1 : vector<32x256xf32>, i32 -> vector<32x256xf32>
    %93 = arith.mulf %92, %66 : vector<32x256xf32>
    %94 = arith.addf %91, %93 : vector<32x256xf32>
    %c239_i32 = arith.constant 239 : i32
    %95 = tpu.dynamic_rotate %30 by %c239_i32 dim 1 : vector<32x256xf32>, i32 -> vector<32x256xf32>
    %96 = arith.mulf %95, %71 : vector<32x256xf32>
    %97 = arith.addf %94, %96 : vector<32x256xf32>
    %98 = vector.broadcast %6 : vector<32x1xf32> to vector<32x256xf32>
    %99 = arith.mulf %97, %98 : vector<32x256xf32>
    %100 = vector.broadcast %8 : vector<32x1xf32> to vector<32x256xf32>
    %101 = arith.addf %99, %100 : vector<32x256xf32>
    %cst_9 = arith.constant 3.000000e+00 : f32
    %102 = vector.broadcast %cst_9 : f32 to vector<32x256xf32>
    %103 = arith.addf %101, %102 : vector<32x256xf32>
    %cst_10 = arith.constant 0.000000e+00 : f32
    %cst_11 = arith.constant 6.000000e+00 : f32
    %104 = vector.broadcast %cst_10 : f32 to vector<32x256xf32>
    %105 = arith.maximumf %104, %103 : vector<32x256xf32>
    %106 = vector.broadcast %cst_11 : f32 to vector<32x256xf32>
    %107 = arith.minimumf %106, %105 : vector<32x256xf32>
    %cst_12 = arith.constant 6.000000e+00 : f32
    %108 = vector.broadcast %cst_12 : f32 to vector<32x256xf32>
    %109 = arith.divf %107, %108 : vector<32x256xf32>
    %110 = arith.mulf %101, %109 : vector<32x256xf32>
    %111 = vector.extract_strided_slice %1 {offsets = [0, 17], sizes = [32, 1], strides = [1, 1]} : vector<32x41xf32> to vector<32x1xf32>
    %112 = vector.extract_strided_slice %2 {offsets = [8, 0], sizes = [1, 256], strides = [1, 1]} : vector<18x256xf32> to vector<1x256xf32>
    %113 = vector.broadcast %111 : vector<32x1xf32> to vector<32x256xf32>
    %114 = vector.broadcast %112 : vector<1x256xf32> to vector<32x256xf32>
    %115 = arith.mulf %113, %114 : vector<32x256xf32>
    %116 = vector.extract_strided_slice %1 {offsets = [0, 18], sizes = [32, 1], strides = [1, 1]} : vector<32x41xf32> to vector<32x1xf32>
    %117 = vector.extract_strided_slice %2 {offsets = [9, 0], sizes = [1, 256], strides = [1, 1]} : vector<18x256xf32> to vector<1x256xf32>
    %118 = vector.broadcast %116 : vector<32x1xf32> to vector<32x256xf32>
    %119 = vector.broadcast %117 : vector<1x256xf32> to vector<32x256xf32>
    %120 = arith.mulf %118, %119 : vector<32x256xf32>
    %121 = vector.extract_strided_slice %1 {offsets = [0, 19], sizes = [32, 1], strides = [1, 1]} : vector<32x41xf32> to vector<32x1xf32>
    %122 = vector.extract_strided_slice %2 {offsets = [10, 0], sizes = [1, 256], strides = [1, 1]} : vector<18x256xf32> to vector<1x256xf32>
    %123 = vector.broadcast %121 : vector<32x1xf32> to vector<32x256xf32>
    %124 = vector.broadcast %122 : vector<1x256xf32> to vector<32x256xf32>
    %125 = arith.mulf %123, %124 : vector<32x256xf32>
    %126 = vector.extract_strided_slice %1 {offsets = [0, 20], sizes = [32, 1], strides = [1, 1]} : vector<32x41xf32> to vector<32x1xf32>
    %127 = vector.extract_strided_slice %2 {offsets = [11, 0], sizes = [1, 256], strides = [1, 1]} : vector<18x256xf32> to vector<1x256xf32>
    %128 = vector.broadcast %126 : vector<32x1xf32> to vector<32x256xf32>
    %129 = vector.broadcast %127 : vector<1x256xf32> to vector<32x256xf32>
    %130 = arith.mulf %128, %129 : vector<32x256xf32>
    %131 = vector.extract_strided_slice %1 {offsets = [0, 21], sizes = [32, 1], strides = [1, 1]} : vector<32x41xf32> to vector<32x1xf32>
    %132 = vector.extract_strided_slice %1 {offsets = [0, 22], sizes = [32, 1], strides = [1, 1]} : vector<32x41xf32> to vector<32x1xf32>
    %133 = vector.extract_strided_slice %2 {offsets = [13, 0], sizes = [1, 256], strides = [1, 1]} : vector<18x256xf32> to vector<1x256xf32>
    %134 = vector.broadcast %132 : vector<32x1xf32> to vector<32x256xf32>
    %135 = vector.broadcast %133 : vector<1x256xf32> to vector<32x256xf32>
    %136 = arith.mulf %134, %135 : vector<32x256xf32>
    %137 = vector.extract_strided_slice %1 {offsets = [0, 23], sizes = [32, 1], strides = [1, 1]} : vector<32x41xf32> to vector<32x1xf32>
    %138 = vector.extract_strided_slice %2 {offsets = [14, 0], sizes = [1, 256], strides = [1, 1]} : vector<18x256xf32> to vector<1x256xf32>
    %139 = vector.broadcast %137 : vector<32x1xf32> to vector<32x256xf32>
    %140 = vector.broadcast %138 : vector<1x256xf32> to vector<32x256xf32>
    %141 = arith.mulf %139, %140 : vector<32x256xf32>
    %142 = vector.extract_strided_slice %1 {offsets = [0, 24], sizes = [32, 1], strides = [1, 1]} : vector<32x41xf32> to vector<32x1xf32>
    %143 = vector.extract_strided_slice %2 {offsets = [15, 0], sizes = [1, 256], strides = [1, 1]} : vector<18x256xf32> to vector<1x256xf32>
    %144 = vector.broadcast %142 : vector<32x1xf32> to vector<32x256xf32>
    %145 = vector.broadcast %143 : vector<1x256xf32> to vector<32x256xf32>
    %146 = arith.mulf %144, %145 : vector<32x256xf32>
    %147 = vector.extract_strided_slice %1 {offsets = [0, 25], sizes = [32, 1], strides = [1, 1]} : vector<32x41xf32> to vector<32x1xf32>
    %148 = vector.extract_strided_slice %2 {offsets = [16, 0], sizes = [1, 256], strides = [1, 1]} : vector<18x256xf32> to vector<1x256xf32>
    %149 = vector.broadcast %147 : vector<32x1xf32> to vector<32x256xf32>
    %150 = vector.broadcast %148 : vector<1x256xf32> to vector<32x256xf32>
    %151 = arith.mulf %149, %150 : vector<32x256xf32>
    %152 = vector.broadcast %6 : vector<32x1xf32> to vector<32x256xf32>
    %153 = arith.mulf %110, %152 : vector<32x256xf32>
    %154 = vector.broadcast %8 : vector<32x1xf32> to vector<32x256xf32>
    %155 = arith.addf %153, %154 : vector<32x256xf32>
    %cst_13 = arith.constant 3.000000e+00 : f32
    %156 = vector.broadcast %cst_13 : f32 to vector<32x256xf32>
    %157 = arith.addf %155, %156 : vector<32x256xf32>
    %cst_14 = arith.constant 0.000000e+00 : f32
    %cst_15 = arith.constant 6.000000e+00 : f32
    %158 = vector.broadcast %cst_14 : f32 to vector<32x256xf32>
    %159 = arith.maximumf %158, %157 : vector<32x256xf32>
    %160 = vector.broadcast %cst_15 : f32 to vector<32x256xf32>
    %161 = arith.minimumf %160, %159 : vector<32x256xf32>
    %cst_16 = arith.constant 6.000000e+00 : f32
    %162 = vector.broadcast %cst_16 : f32 to vector<32x256xf32>
    %163 = arith.divf %161, %162 : vector<32x256xf32>
    %164 = arith.mulf %155, %163 : vector<32x256xf32>
    %165 = vector.broadcast %131 : vector<32x1xf32> to vector<32x256xf32>
    %166 = arith.mulf %164, %165 : vector<32x256xf32>
    %c17_i32_17 = arith.constant 17 : i32
    %167 = tpu.dynamic_rotate %164 by %c17_i32_17 dim 1 : vector<32x256xf32>, i32 -> vector<32x256xf32>
    %168 = arith.mulf %167, %115 : vector<32x256xf32>
    %169 = arith.addf %166, %168 : vector<32x256xf32>
    %c16_i32_18 = arith.constant 16 : i32
    %170 = tpu.dynamic_rotate %164 by %c16_i32_18 dim 1 : vector<32x256xf32>, i32 -> vector<32x256xf32>
    %171 = arith.mulf %170, %120 : vector<32x256xf32>
    %172 = arith.addf %169, %171 : vector<32x256xf32>
    %c15_i32_19 = arith.constant 15 : i32
    %173 = tpu.dynamic_rotate %164 by %c15_i32_19 dim 1 : vector<32x256xf32>, i32 -> vector<32x256xf32>
    %174 = arith.mulf %173, %125 : vector<32x256xf32>
    %175 = arith.addf %172, %174 : vector<32x256xf32>
    %c1_i32_20 = arith.constant 1 : i32
    %176 = tpu.dynamic_rotate %164 by %c1_i32_20 dim 1 : vector<32x256xf32>, i32 -> vector<32x256xf32>
    %177 = arith.mulf %176, %130 : vector<32x256xf32>
    %178 = arith.addf %175, %177 : vector<32x256xf32>
    %c255_i32_21 = arith.constant 255 : i32
    %179 = tpu.dynamic_rotate %164 by %c255_i32_21 dim 1 : vector<32x256xf32>, i32 -> vector<32x256xf32>
    %180 = arith.mulf %179, %136 : vector<32x256xf32>
    %181 = arith.addf %178, %180 : vector<32x256xf32>
    %c241_i32_22 = arith.constant 241 : i32
    %182 = tpu.dynamic_rotate %164 by %c241_i32_22 dim 1 : vector<32x256xf32>, i32 -> vector<32x256xf32>
    %183 = arith.mulf %182, %141 : vector<32x256xf32>
    %184 = arith.addf %181, %183 : vector<32x256xf32>
    %c240_i32_23 = arith.constant 240 : i32
    %185 = tpu.dynamic_rotate %164 by %c240_i32_23 dim 1 : vector<32x256xf32>, i32 -> vector<32x256xf32>
    %186 = arith.mulf %185, %146 : vector<32x256xf32>
    %187 = arith.addf %184, %186 : vector<32x256xf32>
    %c239_i32_24 = arith.constant 239 : i32
    %188 = tpu.dynamic_rotate %164 by %c239_i32_24 dim 1 : vector<32x256xf32>, i32 -> vector<32x256xf32>
    %189 = arith.mulf %188, %151 : vector<32x256xf32>
    %190 = arith.addf %187, %189 : vector<32x256xf32>
    %191 = arith.addf %110, %190 : vector<32x256xf32>
    %cst_25 = arith.constant 3.000000e+00 : f32
    %192 = vector.broadcast %cst_25 : f32 to vector<32x256xf32>
    %193 = arith.addf %190, %192 : vector<32x256xf32>
    %cst_26 = arith.constant 0.000000e+00 : f32
    %cst_27 = arith.constant 6.000000e+00 : f32
    %194 = vector.broadcast %cst_26 : f32 to vector<32x256xf32>
    %195 = arith.maximumf %194, %193 : vector<32x256xf32>
    %196 = vector.broadcast %cst_27 : f32 to vector<32x256xf32>
    %197 = arith.minimumf %196, %195 : vector<32x256xf32>
    %cst_28 = arith.constant 6.000000e+00 : f32
    %198 = vector.broadcast %cst_28 : f32 to vector<32x256xf32>
    %199 = arith.divf %197, %198 : vector<32x256xf32>
    %200 = arith.mulf %190, %199 : vector<32x256xf32>
    %201 = vector.broadcast %131 : vector<32x1xf32> to vector<32x256xf32>
    %202 = arith.mulf %200, %201 : vector<32x256xf32>
    %c17_i32_29 = arith.constant 17 : i32
    %203 = tpu.dynamic_rotate %200 by %c17_i32_29 dim 1 : vector<32x256xf32>, i32 -> vector<32x256xf32>
    %204 = arith.mulf %203, %115 : vector<32x256xf32>
    %205 = arith.addf %202, %204 : vector<32x256xf32>
    %c16_i32_30 = arith.constant 16 : i32
    %206 = tpu.dynamic_rotate %200 by %c16_i32_30 dim 1 : vector<32x256xf32>, i32 -> vector<32x256xf32>
    %207 = arith.mulf %206, %120 : vector<32x256xf32>
    %208 = arith.addf %205, %207 : vector<32x256xf32>
    %c15_i32_31 = arith.constant 15 : i32
    %209 = tpu.dynamic_rotate %200 by %c15_i32_31 dim 1 : vector<32x256xf32>, i32 -> vector<32x256xf32>
    %210 = arith.mulf %209, %125 : vector<32x256xf32>
    %211 = arith.addf %208, %210 : vector<32x256xf32>
    %c1_i32_32 = arith.constant 1 : i32
    %212 = tpu.dynamic_rotate %200 by %c1_i32_32 dim 1 : vector<32x256xf32>, i32 -> vector<32x256xf32>
    %213 = arith.mulf %212, %130 : vector<32x256xf32>
    %214 = arith.addf %211, %213 : vector<32x256xf32>
    %c255_i32_33 = arith.constant 255 : i32
    %215 = tpu.dynamic_rotate %200 by %c255_i32_33 dim 1 : vector<32x256xf32>, i32 -> vector<32x256xf32>
    %216 = arith.mulf %215, %136 : vector<32x256xf32>
    %217 = arith.addf %214, %216 : vector<32x256xf32>
    %c241_i32_34 = arith.constant 241 : i32
    %218 = tpu.dynamic_rotate %200 by %c241_i32_34 dim 1 : vector<32x256xf32>, i32 -> vector<32x256xf32>
    %219 = arith.mulf %218, %141 : vector<32x256xf32>
    %220 = arith.addf %217, %219 : vector<32x256xf32>
    %c240_i32_35 = arith.constant 240 : i32
    %221 = tpu.dynamic_rotate %200 by %c240_i32_35 dim 1 : vector<32x256xf32>, i32 -> vector<32x256xf32>
    %222 = arith.mulf %221, %146 : vector<32x256xf32>
    %223 = arith.addf %220, %222 : vector<32x256xf32>
    %c239_i32_36 = arith.constant 239 : i32
    %224 = tpu.dynamic_rotate %200 by %c239_i32_36 dim 1 : vector<32x256xf32>, i32 -> vector<32x256xf32>
    %225 = arith.mulf %224, %151 : vector<32x256xf32>
    %226 = arith.addf %223, %225 : vector<32x256xf32>
    %227 = vector.broadcast %7 : vector<32x1xf32> to vector<32x256xf32>
    %228 = arith.mulf %226, %227 : vector<32x256xf32>
    %229 = vector.broadcast %9 : vector<32x1xf32> to vector<32x256xf32>
    %230 = arith.addf %228, %229 : vector<32x256xf32>
    %231 = arith.addf %191, %230 : vector<32x256xf32>
    %cst_37 = arith.constant dense<0.000000e+00> : vector<32xf32>
    %232 = vector.multi_reduction <add>, %231, %cst_37 [1] : vector<32x256xf32> to vector<32xf32>
    %233 = vector.shape_cast %232 : vector<32xf32> to vector<32x1xf32>
    %cst_38 = arith.constant 3.906250e-03 : f32
    %234 = vector.broadcast %cst_38 : f32 to vector<32x1xf32>
    %235 = arith.mulf %233, %234 : vector<32x1xf32>
    %236 = vector.broadcast %235 : vector<32x1xf32> to vector<32x4xf32>
    %237 = arith.mulf %11, %236 : vector<32x4xf32>
    %238 = vector.extract_strided_slice %237 {offsets = [0, 0], sizes = [16, 4], strides = [1, 1]} : vector<32x4xf32> to vector<16x4xf32>
    %cst_39 = arith.constant dense<0.000000e+00> : vector<4xf32>
    %239 = vector.multi_reduction <add>, %238, %cst_39 [0] : vector<16x4xf32> to vector<4xf32>
    %240 = vector.shape_cast %239 : vector<4xf32> to vector<1x4xf32>
    %241 = arith.addf %240, %16 : vector<1x4xf32>
    %cst_40 = arith.constant 0.000000e+00 : f32
    %242 = vector.broadcast %cst_40 : f32 to vector<1x4xf32>
    %243 = arith.maximumf %241, %242 : vector<1x4xf32>
    %244 = vector.extract_strided_slice %12 {offsets = [0, 0], sizes = [16, 4], strides = [1, 1]} : vector<32x4xf32> to vector<16x4xf32>
    %245 = vector.broadcast %243 : vector<1x4xf32> to vector<16x4xf32>
    %246 = arith.mulf %244, %245 : vector<16x4xf32>
    %cst_41 = arith.constant dense<0.000000e+00> : vector<16xf32>
    %247 = vector.multi_reduction <add>, %246, %cst_41 [1] : vector<16x4xf32> to vector<16xf32>
    %248 = vector.shape_cast %247 : vector<16xf32> to vector<16x1xf32>
    %249 = vector.extract_strided_slice %10 {offsets = [0, 0], sizes = [16, 1], strides = [1, 1]} : vector<32x1xf32> to vector<16x1xf32>
    %250 = arith.addf %248, %249 : vector<16x1xf32>
    %cst_42 = arith.constant 3.000000e+00 : f32
    %251 = vector.broadcast %cst_42 : f32 to vector<16x1xf32>
    %252 = arith.addf %250, %251 : vector<16x1xf32>
    %cst_43 = arith.constant 0.000000e+00 : f32
    %cst_44 = arith.constant 6.000000e+00 : f32
    %253 = vector.broadcast %cst_43 : f32 to vector<16x1xf32>
    %254 = arith.maximumf %253, %252 : vector<16x1xf32>
    %255 = vector.broadcast %cst_44 : f32 to vector<16x1xf32>
    %256 = arith.minimumf %255, %254 : vector<16x1xf32>
    %cst_45 = arith.constant 6.000000e+00 : f32
    %257 = vector.broadcast %cst_45 : f32 to vector<16x1xf32>
    %258 = arith.divf %256, %257 : vector<16x1xf32>
    %259 = vector.extract_strided_slice %237 {offsets = [16, 0], sizes = [16, 4], strides = [1, 1]} : vector<32x4xf32> to vector<16x4xf32>
    %cst_46 = arith.constant dense<0.000000e+00> : vector<4xf32>
    %260 = vector.multi_reduction <add>, %259, %cst_46 [0] : vector<16x4xf32> to vector<4xf32>
    %261 = vector.shape_cast %260 : vector<4xf32> to vector<1x4xf32>
    %262 = arith.addf %261, %16 : vector<1x4xf32>
    %cst_47 = arith.constant 0.000000e+00 : f32
    %263 = vector.broadcast %cst_47 : f32 to vector<1x4xf32>
    %264 = arith.maximumf %262, %263 : vector<1x4xf32>
    %265 = vector.extract_strided_slice %12 {offsets = [16, 0], sizes = [16, 4], strides = [1, 1]} : vector<32x4xf32> to vector<16x4xf32>
    %266 = vector.broadcast %264 : vector<1x4xf32> to vector<16x4xf32>
    %267 = arith.mulf %265, %266 : vector<16x4xf32>
    %cst_48 = arith.constant dense<0.000000e+00> : vector<16xf32>
    %268 = vector.multi_reduction <add>, %267, %cst_48 [1] : vector<16x4xf32> to vector<16xf32>
    %269 = vector.shape_cast %268 : vector<16xf32> to vector<16x1xf32>
    %270 = vector.extract_strided_slice %10 {offsets = [16, 0], sizes = [16, 1], strides = [1, 1]} : vector<32x1xf32> to vector<16x1xf32>
    %271 = arith.addf %269, %270 : vector<16x1xf32>
    %cst_49 = arith.constant 3.000000e+00 : f32
    %272 = vector.broadcast %cst_49 : f32 to vector<16x1xf32>
    %273 = arith.addf %271, %272 : vector<16x1xf32>
    %cst_50 = arith.constant 0.000000e+00 : f32
    %cst_51 = arith.constant 6.000000e+00 : f32
    %274 = vector.broadcast %cst_50 : f32 to vector<16x1xf32>
    %275 = arith.maximumf %274, %273 : vector<16x1xf32>
    %276 = vector.broadcast %cst_51 : f32 to vector<16x1xf32>
    %277 = arith.minimumf %276, %275 : vector<16x1xf32>
    %cst_52 = arith.constant 6.000000e+00 : f32
    %278 = vector.broadcast %cst_52 : f32 to vector<16x1xf32>
    %279 = arith.divf %277, %278 : vector<16x1xf32>
    %280 = tpu.concatenate %258, %279 in 0 : vector<16x1xf32>, vector<16x1xf32> -> vector<32x1xf32>
    %281 = vector.broadcast %280 : vector<32x1xf32> to vector<32x256xf32>
    %282 = arith.mulf %231, %281 : vector<32x256xf32>
    %cst_53 = arith.constant dense<0.000000e+00> : vector<8x256xf32>
    %283 = tpu.matmul %13, %282, %cst_53 {dimension_numbers = #tpu.dot_dimension_numbers<[1], [0], [0], [1], [0, 0, 1, 1], [], []>} : vector<8x32xf32>, vector<32x256xf32>, vector<8x256xf32> -> vector<8x256xf32>
    %284 = vector.broadcast %14 : vector<8x1xf32> to vector<8x256xf32>
    %285 = arith.mulf %283, %284 : vector<8x256xf32>
    %286 = arith.addf %0, %285 : vector<8x256xf32>
    %287 = vector.broadcast %15 : vector<8x1xf32> to vector<8x256xf32>
    %288 = arith.addf %286, %287 : vector<8x256xf32>
    %c0_54 = arith.constant 0 : index
    %c0_55 = arith.constant 0 : index
    %289 = vector.load %arg4[%c0_54, %c0_55] : memref<8x256xf32, #tpu.memory_space<vmem>>, vector<8x256xf32>
    tpu.vector_store %arg4[%c0_54, %c0_55], %288 {strides = array<i32>} : memref<8x256xf32, #tpu.memory_space<vmem>>, vector<8x256xf32>,
    return
  }
  func.func @transform_0(%arg0: i32) -> (i32, i32) {
    %c0_i32 = arith.constant 0 : i32
    %c0_i32_0 = arith.constant 0 : i32
    %c0_i32_1 = arith.constant 0 : i32
    return %c0_i32, %c0_i32_0 : i32, i32
  }
  func.func @transform_1(%arg0: i32) -> (i32, i32) {
    %c0_i32 = arith.constant 0 : i32
    %c0_i32_0 = arith.constant 0 : i32
    %c0_i32_1 = arith.constant 0 : i32
    return %c0_i32, %c0_i32_0 : i32, i32
  }
  func.func @transform_2(%arg0: i32) -> (i32, i32) {
    %c0_i32 = arith.constant 0 : i32
    %c0_i32_0 = arith.constant 0 : i32
    %c0_i32_1 = arith.constant 0 : i32
    return %c0_i32, %c0_i32_0 : i32, i32
  }
  func.func @transform_3(%arg0: i32) -> (i32, i32) {
    %c0_i32 = arith.constant 0 : i32
    %c0_i32_0 = arith.constant 0 : i32
    %c0_i32_1 = arith.constant 0 : i32
    return %c0_i32, %c0_i32_0 : i32, i32
  }
}

</mosaic_0001>

<llo_original>
// kernel: locality_feed_forward.1
$region0: #{locality_feed_forward.1}
  #allocation0 [shape = 'u32[]', space=smem, size = 0x4, offset = 0x4, fixed_abs, tag = 'smem constant byte address 0x4 - core index']
  #allocation1 [shape = 'u32[144,128]{1,0:T(1,128)}', space=vmem, size = 0x12000, scoped, tag = 'internal scratch']
  %s0 = inlined_call_operand.vmem [shape: f32[8,256], index: 0, kind: input, shape index: {}]
  %s1 = inlined_call_operand.vmem [shape: f32[32,41], index: 1, kind: input, shape index: {}]
  %s2 = inlined_call_operand.vmem [shape: f32[18,256], index: 2, kind: input, shape index: {}]
  %s3 = inlined_call_operand.vmem [shape: f32[8,256], index: 3, kind: output, shape index: {}]
  %s4 = sld [smem:[#allocation0]]
  $region22: #{locality_feed_forward.1} parent=0
    _
  %s6 = ssub.s32 1, %s4
  %s7 = scalar_select 0, %s6, %s4
  // Predicated region
  $region2: #{locality_feed_forward.1} parent=0 // pred_check
    _
  $region3: #{locality_feed_forward.1} parent=0 // pred_check_branch
    %9 = sbr.rel (0) target = $region5
  $region4: #{locality_feed_forward.1} parent=0 // pred_region
    _
  $region5: #{locality_feed_forward.1} parent=0 // pred_fallthru
    _
  // Predicated region
  $region6: #{locality_feed_forward.1} parent=0 // pred_check
    _
  $region7: #{locality_feed_forward.1} parent=0 // pred_check_branch
    %11 = sbr.rel (0) target = $region9
  $region8: #{locality_feed_forward.1} parent=0 // pred_region
    _
  $region9: #{locality_feed_forward.1} parent=0 // pred_fallthru
    _
  // Predicated region
  $region10: #{locality_feed_forward.1} parent=0 // pred_check
    _
  $region11: #{locality_feed_forward.1} parent=0 // pred_check_branch
    %13 = sbr.rel (0) target = $region13
  $region12: #{locality_feed_forward.1} parent=0 // pred_region
    _
  $region13: #{locality_feed_forward.1} parent=0 // pred_fallthru
    _
  %v14 = vld [vmem:[%s0] sm:$0xff]
  %v15 = vld [vmem:[%s0 + $0x8] sm:$0xff]
  %v16 = vld [vmem:[%s1] sm:$0xff]
  %v17 = vld [vmem:[%s1 + $0x8] sm:$0xff]
  %v18 = vld [vmem:[%s1 + $0x10] sm:$0xff]
  %v19 = vld [vmem:[%s1 + $0x18] sm:$0xff]
  %v20 = vld [vmem:[%s2] sm:$0xff]
  %v21 = vld [vmem:[%s2 + $0x10] sm:$0xff]
  %v22 = vld [vmem:[%s2 + $0x18] sm:$0xff]
  %v23 = vld [vmem:[%s2 + $0x20] sm:$0x3]
  %v24 = vld [vmem:[%s2 + $0x28] sm:$0x3]
  %vm25 = vcmask 64512
  %v27 = vsel %vm25, %v16, 0
  %v30 = vsel %vm25, %v17, 0
  %v33 = vsel %vm25, %v18, 0
  %v36 = vsel %vm25, %v19, 0
  %38 = vmatprep.subr.mxu0 0.0
  %39 = vmatpush1.msra.mxu0 0.0
  %40 = vmatprep.subr.mxu0 0.0
  %41 = vmatpush1.msra.mxu0 0.0
  %42 = vmatprep.subr.mxu0 0.0
  %43 = vmatpush1.msra.mxu0 0.0
  %44 = vmatprep.subr.mxu0 0.0
  %45 = vmatpush1.msra.mxu0 0.0
  %46 = vmatprep.subr.mxu0 0.0
  %47 = vmatpush1.msra.mxu0 0.0
  %48 = vmatprep.subr.mxu0 0.0
  %49 = vmatpush1.msra.mxu0 0.0
  %50 = vmatprep.subr.mxu0 0.0
  %51 = vmatpush1.msra.mxu0 0.0
  %52 = vmatprep.subr.mxu0 0.0
  %53 = vmatpush1.msra.mxu0 0.0
  %54 = vmatprep.subr.mxu0 0.0
  %55 = vmatpush1.msra.mxu0 0.0
  %56 = vmatprep.subr.mxu0 0.0
  %57 = vmatpush1.msra.mxu0 0.0
  %58 = vmatprep.subr.mxu0 0.0
  %59 = vmatpush1.msra.mxu0 0.0
  %60 = vmatprep.subr.mxu0 0.0
  %61 = vmatpush1.msra.mxu0 0.0
  %62 = vmatprep.subr.mxu0 0.0
  %63 = vmatpush1.msra.mxu0 0.0
  %64 = vmatprep.subr.mxu0 0.0
  %65 = vmatpush1.msra.mxu0 0.0
  %66 = vmatprep.subr.mxu0 0.0
  %67 = vmatpush1.msra.mxu0 0.0
  %68 = vmatprep.subr.mxu0 %v15
  %69 = vmatpush1.msra.mxu0 %v14
  %70 = vmatprep.subr.mxu0 0.0
  %71 = vmatpush2.msra.mxu0 0.0
  %72 = vmatprep.subr.mxu0 0.0
  %73 = vmatpush2.msra.mxu0 0.0
  %74 = vmatprep.subr.mxu0 0.0
  %75 = vmatpush2.msra.mxu0 0.0
  %76 = vmatprep.subr.mxu0 0.0
  %77 = vmatpush2.msra.mxu0 0.0
  %78 = vmatprep.subr.mxu0 0.0
  %79 = vmatpush2.msra.mxu0 0.0
  %80 = vmatprep.subr.mxu0 0.0
  %81 = vmatpush2.msra.mxu0 0.0
  %82 = vmatprep.subr.mxu0 0.0
  %83 = vmatpush2.msra.mxu0 0.0
  %84 = vmatprep.subr.mxu0 0.0
  %85 = vmatpush2.msra.mxu0 0.0
  %86 = vmatprep.subr.mxu0 0.0
  %87 = vmatpush2.msra.mxu0 0.0
  %88 = vmatprep.subr.mxu0 0.0
  %89 = vmatpush2.msra.mxu0 0.0
  %90 = vmatprep.subr.mxu0 0.0
  %91 = vmatpush2.msra.mxu0 0.0
  %92 = vmatprep.subr.mxu0 0.0
  %93 = vmatpush2.msra.mxu0 0.0
  %94 = vmatprep.subr.mxu0 0.0
  %95 = vmatpush2.msra.mxu0 0.0
  %96 = vmatprep.subr.mxu0 0.0
  %97 = vmatpush2.msra.mxu0 0.0
  %98 = vmatprep.subr.mxu0 0.0
  %99 = vmatpush2.msra.mxu0 0.0
  %100 = vmatprep.subr.mxu0 0.0
  %101 = vmatpush2.msra.mxu0 0.0
  %102 = vmatprep.mubr.f32.mxu0 0.0
  %103 = vmatmul.mubr.f32.gmra.mxu0 %v27
  %v104 = vpop.f32.mrf.mxu0
  %v105 = vadd.f32 0.0, %v104
  %v106 = vpop.f32.mrf.mxu0
  %v107 = vadd.f32 0.0, %v106
  %108 = vmatprep.mubr.f32.mxu0 0.0
  %109 = vmatmul.mubr.f32.gmra.mxu0 %v30
  %v110 = vpop.f32.mrf.mxu0
  %v111 = vadd.f32 0.0, %v110
  %v112 = vpop.f32.mrf.mxu0
  %v113 = vadd.f32 0.0, %v112
  %114 = vmatprep.mubr.f32.mxu0 0.0
  %115 = vmatmul.mubr.f32.gmra.mxu0 %v33
  %v116 = vpop.f32.mrf.mxu0
  %v117 = vadd.f32 0.0, %v116
  %v118 = vpop.f32.mrf.mxu0
  %v119 = vadd.f32 0.0, %v118
  %120 = vmatprep.mubr.f32.mxu0 0.0
  %121 = vmatmul.mubr.f32.gmra.mxu0 %v36
  %v122 = vpop.f32.mrf.mxu0
  %v123 = vadd.f32 0.0, %v122
  %v124 = vpop.f32.mrf.mxu0
  %v125 = vadd.f32 0.0, %v124
  %126 = vdwg.mxu0
  %127 = vset.pattern.permute.xlu0 26
  %128 = vperm.xlu0 %127, %v16
  %v129 = vpop.permute.xlu0 %128
  %131 = vset.pattern.permute.xlu0 26
  %132 = vperm.xlu0 %131, %v17
  %v133 = vpop.permute.xlu0 %132
  %135 = vset.pattern.permute.xlu0 26
  %136 = vperm.xlu0 %135, %v18
  %v137 = vpop.permute.xlu0 %136
  %139 = vset.pattern.permute.xlu0 26
  %140 = vperm.xlu0 %139, %v19
  %v141 = vpop.permute.xlu0 %140
  %v143 = vmul.f32 %v105, %v129
  %v144 = vmul.f32 %v107, %v129
  %v145 = vmul.f32 %v111, %v133
  %v146 = vmul.f32 %v113, %v133
  %v147 = vmul.f32 %v117, %v137
  %v148 = vmul.f32 %v119, %v137
  %v149 = vmul.f32 %v123, %v141
  %v150 = vmul.f32 %v125, %v141
  %151 = vset.pattern.permute.xlu0 27
  %152 = vperm.xlu0 %151, %v16
  %v153 = vpop.permute.xlu0 %152
  %155 = vset.pattern.permute.xlu0 27
  %156 = vperm.xlu0 %155, %v17
  %v157 = vpop.permute.xlu0 %156
  %159 = vset.pattern.permute.xlu0 27
  %160 = vperm.xlu0 %159, %v18
  %v161 = vpop.permute.xlu0 %160
  %163 = vset.pattern.permute.xlu0 27
  %164 = vperm.xlu0 %163, %v19
  %v165 = vpop.permute.xlu0 %164
  %v167 = vadd.f32 %v143, %v153
  %v168 = vadd.f32 %v144, %v153
  %v169 = vadd.f32 %v145, %v157
  %v170 = vadd.f32 %v146, %v157
  %v171 = vadd.f32 %v147, %v161
  %v172 = vadd.f32 %v148, %v161
  %v173 = vadd.f32 %v149, %v165
  %v174 = vadd.f32 %v150, %v165
  %v175 = vadd.f32 %v167, 3.0
  %v176 = vadd.f32 %v168, 3.0
  %v177 = vadd.f32 %v169, 3.0
  %v178 = vadd.f32 %v170, 3.0
  %v179 = vadd.f32 %v171, 3.0
  %v180 = vadd.f32 %v172, 3.0
  %v181 = vadd.f32 %v173, 3.0
  %v182 = vadd.f32 %v174, 3.0
  %v183 = vmax.f32 %v175, 0.0
  %v184 = vmax.f32 %v176, 0.0
  %v185 = vmax.f32 %v177, 0.0
  %v186 = vmax.f32 %v178, 0.0
  %v187 = vmax.f32 %v179, 0.0
  %v188 = vmax.f32 %v180, 0.0
  %v189 = vmax.f32 %v181, 0.0
  %v190 = vmax.f32 %v182, 0.0
  %v191 = vmin.f32 %v183, 6.0
  %v192 = vmin.f32 %v184, 6.0
  %v193 = vmin.f32 %v185, 6.0
  %v194 = vmin.f32 %v186, 6.0
  %v195 = vmin.f32 %v187, 6.0
  %v196 = vmin.f32 %v188, 6.0
  %v197 = vmin.f32 %v189, 6.0
  %v198 = vmin.f32 %v190, 6.0
  %v199 = vrcp.pop 6.0
  %v200 = vmul.f32 %v191, %v199
  %v201 = vmul.f32 %v192, %v199
  %v202 = vmul.f32 %v193, %v199
  %v203 = vmul.f32 %v194, %v199
  %v204 = vmul.f32 %v195, %v199
  %v205 = vmul.f32 %v196, %v199
  %v206 = vmul.f32 %v197, %v199
  %v207 = vmul.f32 %v198, %v199
  %v208 = vmul.f32 %v167, %v200
  %v209 = vmul.f32 %v168, %v201
  %v210 = vmul.f32 %v169, %v202
  %v211 = vmul.f32 %v170, %v203
  %v212 = vmul.f32 %v171, %v204
  %v213 = vmul.f32 %v172, %v205
  %v214 = vmul.f32 %v173, %v206
  %v215 = vmul.f32 %v174, %v207
  %216 = vset.pattern.permute.xlu0 8
  %217 = vperm.xlu0 %216, %v16
  %v218 = vpop.permute.xlu0 %217
  %220 = vset.pattern.permute.xlu0 8
  %221 = vperm.xlu0 %220, %v17
  %v222 = vpop.permute.xlu0 %221
  %224 = vset.pattern.permute.xlu0 8
  %225 = vperm.xlu0 %224, %v18
  %v226 = vpop.permute.xlu0 %225
  %228 = vset.pattern.permute.xlu0 8
  %229 = vperm.xlu0 %228, %v19
  %v230 = vpop.permute.xlu0 %229
  %v232 = vlaneseq
  %v233 = vshrl.u32 %v232, 7
  %v234 = vsub.s32 0, %v233
  %v235 = vrot.slane %v21, %v234
  %v236 = vlaneseq
  %v237 = vshrl.u32 %v236, 7
  %v238 = vsub.s32 0, %v237
  %v239 = vrot.slane %v22, %v238
  %v240 = vmul.f32 %v218, %v235
  %v241 = vmul.f32 %v218, %v239
  %v242 = vmul.f32 %v222, %v235
  %v243 = vmul.f32 %v222, %v239
  %v244 = vmul.f32 %v226, %v235
  %v245 = vmul.f32 %v226, %v239
  %v246 = vmul.f32 %v230, %v235
  %v247 = vmul.f32 %v230, %v239
  %248 = vset.pattern.permute.xlu0 9
  %249 = vperm.xlu0 %248, %v16
  %v250 = vpop.permute.xlu0 %249
  %252 = vset.pattern.permute.xlu0 9
  %253 = vperm.xlu0 %252, %v17
  %v254 = vpop.permute.xlu0 %253
  %256 = vset.pattern.permute.xlu0 9
  %257 = vperm.xlu0 %256, %v18
  %v258 = vpop.permute.xlu0 %257
  %260 = vset.pattern.permute.xlu0 9
  %261 = vperm.xlu0 %260, %v19
  %v262 = vpop.permute.xlu0 %261
  %v264 = vlaneseq
  %v265 = vshrl.u32 %v264, 7
  %v266 = vsub.s32 1, %v265
  %v267 = vrot.slane %v21, %v266
  %v268 = vlaneseq
  %v269 = vshrl.u32 %v268, 7
  %v270 = vsub.s32 1, %v269
  %v271 = vrot.slane %v22, %v270
  %v272 = vmul.f32 %v250, %v267
  %v273 = vmul.f32 %v250, %v271
  %v274 = vmul.f32 %v254, %v267
  %v275 = vmul.f32 %v254, %v271
  %v276 = vmul.f32 %v258, %v267
  %v277 = vmul.f32 %v258, %v271
  %v278 = vmul.f32 %v262, %v267
  %v279 = vmul.f32 %v262, %v271
  %280 = vset.pattern.permute.xlu0 10
  %281 = vperm.xlu0 %280, %v16
  %v282 = vpop.permute.xlu0 %281
  %284 = vset.pattern.permute.xlu0 10
  %285 = vperm.xlu0 %284, %v17
  %v286 = vpop.permute.xlu0 %285
  %288 = vset.pattern.permute.xlu0 10
  %289 = vperm.xlu0 %288, %v18
  %v290 = vpop.permute.xlu0 %289
  %292 = vset.pattern.permute.xlu0 10
  %293 = vperm.xlu0 %292, %v19
  %v294 = vpop.permute.xlu0 %293
  %v296 = vlaneseq
  %v297 = vshrl.u32 %v296, 7
  %v298 = vsub.s32 2, %v297
  %v299 = vrot.slane %v21, %v298
  %v300 = vlaneseq
  %v301 = vshrl.u32 %v300, 7
  %v302 = vsub.s32 2, %v301
  %v303 = vrot.slane %v22, %v302
  %v304 = vmul.f32 %v282, %v299
  %v305 = vmul.f32 %v282, %v303
  %v306 = vmul.f32 %v286, %v299
  %v307 = vmul.f32 %v286, %v303
  %v308 = vmul.f32 %v290, %v299
  %v309 = vmul.f32 %v290, %v303
  %v310 = vmul.f32 %v294, %v299
  %v311 = vmul.f32 %v294, %v303
  %312 = vset.pattern.permute.xlu0 11
  %313 = vperm.xlu0 %312, %v16
  %v314 = vpop.permute.xlu0 %313
  %316 = vset.pattern.permute.xlu0 11
  %317 = vperm.xlu0 %316, %v17
  %v318 = vpop.permute.xlu0 %317
  %320 = vset.pattern.permute.xlu0 11
  %321 = vperm.xlu0 %320, %v18
  %v322 = vpop.permute.xlu0 %321
  %324 = vset.pattern.permute.xlu0 11
  %325 = vperm.xlu0 %324, %v19
  %v326 = vpop.permute.xlu0 %325
  %v328 = vlaneseq
  %v329 = vshrl.u32 %v328, 7
  %v330 = vsub.s32 3, %v329
  %v331 = vrot.slane %v21, %v330
  %v332 = vlaneseq
  %v333 = vshrl.u32 %v332, 7
  %v334 = vsub.s32 3, %v333
  %v335 = vrot.slane %v22, %v334
  %v336 = vmul.f32 %v314, %v331
  %v337 = vmul.f32 %v314, %v335
  %v338 = vmul.f32 %v318, %v331
  %v339 = vmul.f32 %v318, %v335
  %v340 = vmul.f32 %v322, %v331
  %v341 = vmul.f32 %v322, %v335
  %v342 = vmul.f32 %v326, %v331
  %v343 = vmul.f32 %v326, %v335
  %344 = vset.pattern.permute.xlu0 13
  %345 = vperm.xlu0 %344, %v16
  %v346 = vpop.permute.xlu0 %345
  %348 = vset.pattern.permute.xlu0 13
  %349 = vperm.xlu0 %348, %v17
  %v350 = vpop.permute.xlu0 %349
  %352 = vset.pattern.permute.xlu0 13
  %353 = vperm.xlu0 %352, %v18
  %v354 = vpop.permute.xlu0 %353
  %356 = vset.pattern.permute.xlu0 13
  %357 = vperm.xlu0 %356, %v19
  %v358 = vpop.permute.xlu0 %357
  %v360 = vlaneseq
  %v361 = vshrl.u32 %v360, 7
  %v362 = vsub.s32 5, %v361
  %v363 = vrot.slane %v21, %v362
  %v364 = vlaneseq
  %v365 = vshrl.u32 %v364, 7
  %v366 = vsub.s32 5, %v365
  %v367 = vrot.slane %v22, %v366
  %v368 = vmul.f32 %v346, %v363
  %v369 = vmul.f32 %v346, %v367
  %v370 = vmul.f32 %v350, %v363
  %v371 = vmul.f32 %v350, %v367
  %v372 = vmul.f32 %v354, %v363
  %v373 = vmul.f32 %v354, %v367
  %v374 = vmul.f32 %v358, %v363
  %v375 = vmul.f32 %v358, %v367
  %376 = vset.pattern.permute.xlu0 14
  %377 = vperm.xlu0 %376, %v16
  %v378 = vpop.permute.xlu0 %377
  %380 = vset.pattern.permute.xlu0 14
  %381 = vperm.xlu0 %380, %v17
  %v382 = vpop.permute.xlu0 %381
  %384 = vset.pattern.permute.xlu0 14
  %385 = vperm.xlu0 %384, %v18
  %v386 = vpop.permute.xlu0 %385
  %388 = vset.pattern.permute.xlu0 14
  %389 = vperm.xlu0 %388, %v19
  %v390 = vpop.permute.xlu0 %389
  %v392 = vlaneseq
  %v393 = vshrl.u32 %v392, 7
  %v394 = vsub.s32 6, %v393
  %v395 = vrot.slane %v21, %v394
  %v396 = vlaneseq
  %v397 = vshrl.u32 %v396, 7
  %v398 = vsub.s32 6, %v397
  %v399 = vrot.slane %v22, %v398
  %v400 = vmul.f32 %v378, %v395
  %v401 = vmul.f32 %v378, %v399
  %v402 = vmul.f32 %v382, %v395
  %v403 = vmul.f32 %v382, %v399
  %v404 = vmul.f32 %v386, %v395
  %v405 = vmul.f32 %v386, %v399
  %v406 = vmul.f32 %v390, %v395
  %v407 = vmul.f32 %v390, %v399
  %408 = vset.pattern.permute.xlu0 15
  %409 = vperm.xlu0 %408, %v16
  %v410 = vpop.permute.xlu0 %409
  %412 = vset.pattern.permute.xlu0 15
  %413 = vperm.xlu0 %412, %v17
  %v414 = vpop.permute.xlu0 %413
  %416 = vset.pattern.permute.xlu0 15
  %417 = vperm.xlu0 %416, %v18
  %v418 = vpop.permute.xlu0 %417
  %420 = vset.pattern.permute.xlu0 15
  %421 = vperm.xlu0 %420, %v19
  %v422 = vpop.permute.xlu0 %421
  %v424 = vlaneseq
  %v425 = vshrl.u32 %v424, 7
  %v426 = vsub.s32 7, %v425
  %v427 = vrot.slane %v21, %v426
  %v428 = vlaneseq
  %v429 = vshrl.u32 %v428, 7
  %v430 = vsub.s32 7, %v429
  %v431 = vrot.slane %v22, %v430
  %v432 = vmul.f32 %v410, %v427
  %v433 = vmul.f32 %v410, %v431
  %v434 = vmul.f32 %v414, %v427
  %v435 = vmul.f32 %v414, %v431
  %v436 = vmul.f32 %v418, %v427
  %v437 = vmul.f32 %v418, %v431
  %v438 = vmul.f32 %v422, %v427
  %v439 = vmul.f32 %v422, %v431
  %440 = vset.pattern.permute.xlu0 16
  %441 = vperm.xlu0 %440, %v16
  %v442 = vpop.permute.xlu0 %441
  %444 = vset.pattern.permute.xlu0 16
  %445 = vperm.xlu0 %444, %v17
  %v446 = vpop.permute.xlu0 %445
  %448 = vset.pattern.permute.xlu0 16
  %449 = vperm.xlu0 %448, %v18
  %v450 = vpop.permute.xlu0 %449
  %452 = vset.pattern.permute.xlu0 16
  %453 = vperm.xlu0 %452, %v19
  %v454 = vpop.permute.xlu0 %453
  %v456 = vlaneseq
  %v457 = vshrl.u32 %v456, 7
  %v458 = vsub.s32 0, %v457
  %v459 = vrot.slane %v23, %v458
  %v460 = vlaneseq
  %v461 = vshrl.u32 %v460, 7
  %v462 = vsub.s32 0, %v461
  %v463 = vrot.slane %v24, %v462
  %v464 = vmul.f32 %v442, %v459
  %v465 = vmul.f32 %v442, %v463
  %v466 = vmul.f32 %v446, %v459
  %v467 = vmul.f32 %v446, %v463
  %v468 = vmul.f32 %v450, %v459
  %v469 = vmul.f32 %v450, %v463
  %v470 = vmul.f32 %v454, %v459
  %v471 = vmul.f32 %v454, %v463
  %472 = vset.pattern.permute.xlu0 12
  %473 = vperm.xlu0 %472, %v16
  %v474 = vpop.permute.xlu0 %473
  %476 = vset.pattern.permute.xlu0 12
  %477 = vperm.xlu0 %476, %v17
  %v478 = vpop.permute.xlu0 %477
  %480 = vset.pattern.permute.xlu0 12
  %481 = vperm.xlu0 %480, %v18
  %v482 = vpop.permute.xlu0 %481
  %484 = vset.pattern.permute.xlu0 12
  %485 = vperm.xlu0 %484, %v19
  %v486 = vpop.permute.xlu0 %485
  %v488 = vmul.f32 %v208, %v474
  %v489 = vmul.f32 %v209, %v474
  %v490 = vmul.f32 %v210, %v478
  %v491 = vmul.f32 %v211, %v478
  %v492 = vmul.f32 %v212, %v482
  %v493 = vmul.f32 %v213, %v482
  %v494 = vmul.f32 %v214, %v486
  %v495 = vmul.f32 %v215, %v486
  %496 = vrot.lane.b32.xlu0 %v208, 17
  %v497 = vpop.permute.xlu0 %496
  %498 = vrot.lane.b32.xlu0 %v210, 17
  %v499 = vpop.permute.xlu0 %498
  %500 = vrot.lane.b32.xlu0 %v212, 17
  %v501 = vpop.permute.xlu0 %500
  %502 = vrot.lane.b32.xlu0 %v214, 17
  %v503 = vpop.permute.xlu0 %502
  %504 = vrot.lane.b32.xlu0 %v209, 17
  %v505 = vpop.permute.xlu0 %504
  %506 = vrot.lane.b32.xlu0 %v211, 17
  %v507 = vpop.permute.xlu0 %506
  %508 = vrot.lane.b32.xlu0 %v213, 17
  %v509 = vpop.permute.xlu0 %508
  %510 = vrot.lane.b32.xlu0 %v215, 17
  %v511 = vpop.permute.xlu0 %510
  %v512 = vlaneseq
  %v513 = vand.u32 %v512, 127
  %vm514 = vcmp.lt.s32.totalorder %v513, 17
  %v515 = vsel %vm514, %v497, %v505
  %v516 = vsel %vm514, %v499, %v507
  %v517 = vsel %vm514, %v501, %v509
  %v518 = vsel %vm514, %v503, %v511
  %v519 = vsel %vm514, %v505, %v497
  %v520 = vsel %vm514, %v507, %v499
  %v521 = vsel %vm514, %v509, %v501
  %v522 = vsel %vm514, %v511, %v503
  %v523 = vmul.f32 %v519, %v240
  %v524 = vmul.f32 %v515, %v241
  %v525 = vmul.f32 %v520, %v242
  %v526 = vmul.f32 %v516, %v243
  %v527 = vmul.f32 %v521, %v244
  %v528 = vmul.f32 %v517, %v245
  %v529 = vmul.f32 %v522, %v246
  %v530 = vmul.f32 %v518, %v247
  %v531 = vadd.f32 %v488, %v523
  %v532 = vadd.f32 %v489, %v524
  %v533 = vadd.f32 %v490, %v525
  %v534 = vadd.f32 %v491, %v526
  %v535 = vadd.f32 %v492, %v527
  %v536 = vadd.f32 %v493, %v528
  %v537 = vadd.f32 %v494, %v529
  %v538 = vadd.f32 %v495, %v530
  %539 = vrot.lane.b32.xlu0 %v208, 16
  %v540 = vpop.permute.xlu0 %539
  %541 = vrot.lane.b32.xlu0 %v210, 16
  %v542 = vpop.permute.xlu0 %541
  %543 = vrot.lane.b32.xlu0 %v212, 16
  %v544 = vpop.permute.xlu0 %543
  %545 = vrot.lane.b32.xlu0 %v214, 16
  %v546 = vpop.permute.xlu0 %545
  %547 = vrot.lane.b32.xlu0 %v209, 16
  %v548 = vpop.permute.xlu0 %547
  %549 = vrot.lane.b32.xlu0 %v211, 16
  %v550 = vpop.permute.xlu0 %549
  %551 = vrot.lane.b32.xlu0 %v213, 16
  %v552 = vpop.permute.xlu0 %551
  %553 = vrot.lane.b32.xlu0 %v215, 16
  %v554 = vpop.permute.xlu0 %553
  %vm555 = vcmp.lt.s32.totalorder %v513, 16
  %v556 = vsel %vm555, %v540, %v548
  %v557 = vsel %vm555, %v542, %v550
  %v558 = vsel %vm555, %v544, %v552
  %v559 = vsel %vm555, %v546, %v554
  %v560 = vsel %vm555, %v548, %v540
  %v561 = vsel %vm555, %v550, %v542
  %v562 = vsel %vm555, %v552, %v544
  %v563 = vsel %vm555, %v554, %v546
  %v564 = vmul.f32 %v560, %v272
  %v565 = vmul.f32 %v556, %v273
  %v566 = vmul.f32 %v561, %v274
  %v567 = vmul.f32 %v557, %v275
  %v568 = vmul.f32 %v562, %v276
  %v569 = vmul.f32 %v558, %v277
  %v570 = vmul.f32 %v563, %v278
  %v571 = vmul.f32 %v559, %v279
  %v572 = vadd.f32 %v531, %v564
  %v573 = vadd.f32 %v532, %v565
  %v574 = vadd.f32 %v533, %v566
  %v575 = vadd.f32 %v534, %v567
  %v576 = vadd.f32 %v535, %v568
  %v577 = vadd.f32 %v536, %v569
  %v578 = vadd.f32 %v537, %v570
  %v579 = vadd.f32 %v538, %v571
  %580 = vrot.lane.b32.xlu0 %v208, 15
  %v581 = vpop.permute.xlu0 %580
  %582 = vrot.lane.b32.xlu0 %v210, 15
  %v583 = vpop.permute.xlu0 %582
  %584 = vrot.lane.b32.xlu0 %v212, 15
  %v585 = vpop.permute.xlu0 %584
  %586 = vrot.lane.b32.xlu0 %v214, 15
  %v587 = vpop.permute.xlu0 %586
  %588 = vrot.lane.b32.xlu0 %v209, 15
  %v589 = vpop.permute.xlu0 %588
  %590 = vrot.lane.b32.xlu0 %v211, 15
  %v591 = vpop.permute.xlu0 %590
  %592 = vrot.lane.b32.xlu0 %v213, 15
  %v593 = vpop.permute.xlu0 %592
  %594 = vrot.lane.b32.xlu0 %v215, 15
  %v595 = vpop.permute.xlu0 %594
  %vm596 = vcmp.lt.s32.totalorder %v513, 15
  %v597 = vsel %vm596, %v581, %v589
  %v598 = vsel %vm596, %v583, %v591
  %v599 = vsel %vm596, %v585, %v593
  %v600 = vsel %vm596, %v587, %v595
  %v601 = vsel %vm596, %v589, %v581
  %v602 = vsel %vm596, %v591, %v583
  %v603 = vsel %vm596, %v593, %v585
  %v604 = vsel %vm596, %v595, %v587
  %v605 = vmul.f32 %v601, %v304
  %v606 = vmul.f32 %v597, %v305
  %v607 = vmul.f32 %v602, %v306
  %v608 = vmul.f32 %v598, %v307
  %v609 = vmul.f32 %v603, %v308
  %v610 = vmul.f32 %v599, %v309
  %v611 = vmul.f32 %v604, %v310
  %v612 = vmul.f32 %v600, %v311
  %v613 = vadd.f32 %v572, %v605
  %v614 = vadd.f32 %v573, %v606
  %v615 = vadd.f32 %v574, %v607
  %v616 = vadd.f32 %v575, %v608
  %v617 = vadd.f32 %v576, %v609
  %v618 = vadd.f32 %v577, %v610
  %v619 = vadd.f32 %v578, %v611
  %v620 = vadd.f32 %v579, %v612
  %621 = vrot.lane.b32.xlu0 %v208, 1
  %v622 = vpop.permute.xlu0 %621
  %623 = vrot.lane.b32.xlu0 %v210, 1
  %v624 = vpop.permute.xlu0 %623
  %625 = vrot.lane.b32.xlu0 %v212, 1
  %v626 = vpop.permute.xlu0 %625
  %627 = vrot.lane.b32.xlu0 %v214, 1
  %v628 = vpop.permute.xlu0 %627
  %629 = vrot.lane.b32.xlu0 %v209, 1
  %v630 = vpop.permute.xlu0 %629
  %631 = vrot.lane.b32.xlu0 %v211, 1
  %v632 = vpop.permute.xlu0 %631
  %633 = vrot.lane.b32.xlu0 %v213, 1
  %v634 = vpop.permute.xlu0 %633
  %635 = vrot.lane.b32.xlu0 %v215, 1
  %v636 = vpop.permute.xlu0 %635
  %vm637 = vcmp.lt.s32.totalorder %v513, 1
  %v638 = vsel %vm637, %v622, %v630
  %v639 = vsel %vm637, %v624, %v632
  %v640 = vsel %vm637, %v626, %v634
  %v641 = vsel %vm637, %v628, %v636
  %v642 = vsel %vm637, %v630, %v622
  %v643 = vsel %vm637, %v632, %v624
  %v644 = vsel %vm637, %v634, %v626
  %v645 = vsel %vm637, %v636, %v628
  %v646 = vmul.f32 %v642, %v336
  %v647 = vmul.f32 %v638, %v337
  %v648 = vmul.f32 %v643, %v338
  %v649 = vmul.f32 %v639, %v339
  %v650 = vmul.f32 %v644, %v340
  %v651 = vmul.f32 %v640, %v341
  %v652 = vmul.f32 %v645, %v342
  %v653 = vmul.f32 %v641, %v343
  %v654 = vadd.f32 %v613, %v646
  %v655 = vadd.f32 %v614, %v647
  %v656 = vadd.f32 %v615, %v648
  %v657 = vadd.f32 %v616, %v649
  %v658 = vadd.f32 %v617, %v650
  %v659 = vadd.f32 %v618, %v651
  %v660 = vadd.f32 %v619, %v652
  %v661 = vadd.f32 %v620, %v653
  %662 = vrot.lane.b32.xlu0 %v208, 127
  %v663 = vpop.permute.xlu0 %662
  %664 = vrot.lane.b32.xlu0 %v210, 127
  %v665 = vpop.permute.xlu0 %664
  %666 = vrot.lane.b32.xlu0 %v212, 127
  %v667 = vpop.permute.xlu0 %666
  %668 = vrot.lane.b32.xlu0 %v214, 127
  %v669 = vpop.permute.xlu0 %668
  %670 = vrot.lane.b32.xlu0 %v209, 127
  %v671 = vpop.permute.xlu0 %670
  %672 = vrot.lane.b32.xlu0 %v211, 127
  %v673 = vpop.permute.xlu0 %672
  %674 = vrot.lane.b32.xlu0 %v213, 127
  %v675 = vpop.permute.xlu0 %674
  %676 = vrot.lane.b32.xlu0 %v215, 127
  %v677 = vpop.permute.xlu0 %676
  %vm678 = vcmp.lt.s32.totalorder %v513, 127
  %v679 = vsel %vm678, %v663, %v671
  %v680 = vsel %vm678, %v665, %v673
  %v681 = vsel %vm678, %v667, %v675
  %v682 = vsel %vm678, %v669, %v677
  %v683 = vsel %vm678, %v671, %v663
  %v684 = vsel %vm678, %v673, %v665
  %v685 = vsel %vm678, %v675, %v667
  %v686 = vsel %vm678, %v677, %v669
  %v687 = vmul.f32 %v679, %v368
  %v688 = vmul.f32 %v683, %v369
  %v689 = vmul.f32 %v680, %v370
  %v690 = vmul.f32 %v684, %v371
  %v691 = vmul.f32 %v681, %v372
  %v692 = vmul.f32 %v685, %v373
  %v693 = vmul.f32 %v682, %v374
  %v694 = vmul.f32 %v686, %v375
  %v695 = vadd.f32 %v654, %v687
  %v696 = vadd.f32 %v655, %v688
  %v697 = vadd.f32 %v656, %v689
  %v698 = vadd.f32 %v657, %v690
  %v699 = vadd.f32 %v658, %v691
  %v700 = vadd.f32 %v659, %v692
  %v701 = vadd.f32 %v660, %v693
  %v702 = vadd.f32 %v661, %v694
  %703 = vrot.lane.b32.xlu0 %v208, 113
  %v704 = vpop.permute.xlu0 %703
  %705 = vrot.lane.b32.xlu0 %v210, 113
  %v706 = vpop.permute.xlu0 %705
  %707 = vrot.lane.b32.xlu0 %v212, 113
  %v708 = vpop.permute.xlu0 %707
  %709 = vrot.lane.b32.xlu0 %v214, 113
  %v710 = vpop.permute.xlu0 %709
  %711 = vrot.lane.b32.xlu0 %v209, 113
  %v712 = vpop.permute.xlu0 %711
  %713 = vrot.lane.b32.xlu0 %v211, 113
  %v714 = vpop.permute.xlu0 %713
  %715 = vrot.lane.b32.xlu0 %v213, 113
  %v716 = vpop.permute.xlu0 %715
  %717 = vrot.lane.b32.xlu0 %v215, 113
  %v718 = vpop.permute.xlu0 %717
  %vm719 = vcmp.lt.s32.totalorder %v513, 113
  %v720 = vsel %vm719, %v704, %v712
  %v721 = vsel %vm719, %v706, %v714
  %v722 = vsel %vm719, %v708, %v716
  %v723 = vsel %vm719, %v710, %v718
  %v724 = vsel %vm719, %v712, %v704
  %v725 = vsel %vm719, %v714, %v706
  %v726 = vsel %vm719, %v716, %v708
  %v727 = vsel %vm719, %v718, %v710
  %v728 = vmul.f32 %v720, %v400
  %v729 = vmul.f32 %v724, %v401
  %v730 = vmul.f32 %v721, %v402
  %v731 = vmul.f32 %v725, %v403
  %v732 = vmul.f32 %v722, %v404
  %v733 = vmul.f32 %v726, %v405
  %v734 = vmul.f32 %v723, %v406
  %v735 = vmul.f32 %v727, %v407
  %v736 = vadd.f32 %v695, %v728
  %v737 = vadd.f32 %v696, %v729
  %v738 = vadd.f32 %v697, %v730
  %v739 = vadd.f32 %v698, %v731
  %v740 = vadd.f32 %v699, %v732
  %v741 = vadd.f32 %v700, %v733
  %v742 = vadd.f32 %v701, %v734
  %v743 = vadd.f32 %v702, %v735
  %744 = vrot.lane.b32.xlu0 %v208, 112
  %v745 = vpop.permute.xlu0 %744
  %746 = vrot.lane.b32.xlu0 %v210, 112
  %v747 = vpop.permute.xlu0 %746
  %748 = vrot.lane.b32.xlu0 %v212, 112
  %v749 = vpop.permute.xlu0 %748
  %750 = vrot.lane.b32.xlu0 %v214, 112
  %v751 = vpop.permute.xlu0 %750
  %752 = vrot.lane.b32.xlu0 %v209, 112
  %v753 = vpop.permute.xlu0 %752
  %754 = vrot.lane.b32.xlu0 %v211, 112
  %v755 = vpop.permute.xlu0 %754
  %756 = vrot.lane.b32.xlu0 %v213, 112
  %v757 = vpop.permute.xlu0 %756
  %758 = vrot.lane.b32.xlu0 %v215, 112
  %v759 = vpop.permute.xlu0 %758
  %vm760 = vcmp.lt.s32.totalorder %v513, 112
  %v761 = vsel %vm760, %v745, %v753
  %v762 = vsel %vm760, %v747, %v755
  %v763 = vsel %vm760, %v749, %v757
  %v764 = vsel %vm760, %v751, %v759
  %v765 = vsel %vm760, %v753, %v745
  %v766 = vsel %vm760, %v755, %v747
  %v767 = vsel %vm760, %v757, %v749
  %v768 = vsel %vm760, %v759, %v751
  %v769 = vmul.f32 %v761, %v432
  %v770 = vmul.f32 %v765, %v433
  %v771 = vmul.f32 %v762, %v434
  %v772 = vmul.f32 %v766, %v435
  %v773 = vmul.f32 %v763, %v436
  %v774 = vmul.f32 %v767, %v437
  %v775 = vmul.f32 %v764, %v438
  %v776 = vmul.f32 %v768, %v439
  %v777 = vadd.f32 %v736, %v769
  %v778 = vadd.f32 %v737, %v770
  %v779 = vadd.f32 %v738, %v771
  %v780 = vadd.f32 %v739, %v772
  %v781 = vadd.f32 %v740, %v773
  %v782 = vadd.f32 %v741, %v774
  %v783 = vadd.f32 %v742, %v775
  %v784 = vadd.f32 %v743, %v776
  %785 = vrot.lane.b32.xlu0 %v208, 111
  %v786 = vpop.permute.xlu0 %785
  %787 = vrot.lane.b32.xlu0 %v210, 111
  %v788 = vpop.permute.xlu0 %787
  %789 = vrot.lane.b32.xlu0 %v212, 111
  %v790 = vpop.permute.xlu0 %789
  %791 = vrot.lane.b32.xlu0 %v214, 111
  %v792 = vpop.permute.xlu0 %791
  %793 = vrot.lane.b32.xlu0 %v209, 111
  %v794 = vpop.permute.xlu0 %793
  %795 = vrot.lane.b32.xlu0 %v211, 111
  %v796 = vpop.permute.xlu0 %795
  %797 = vrot.lane.b32.xlu0 %v213, 111
  %v798 = vpop.permute.xlu0 %797
  %799 = vrot.lane.b32.xlu0 %v215, 111
  %v800 = vpop.permute.xlu0 %799
  %vm801 = vcmp.lt.s32.totalorder %v513, 111
  %v802 = vsel %vm801, %v786, %v794
  %v803 = vsel %vm801, %v788, %v796
  %v804 = vsel %vm801, %v790, %v798
  %v805 = vsel %vm801, %v792, %v800
  %v806 = vsel %vm801, %v794, %v786
  %v807 = vsel %vm801, %v796, %v788
  %v808 = vsel %vm801, %v798, %v790
  %v809 = vsel %vm801, %v800, %v792
  %v810 = vmul.f32 %v802, %v464
  %v811 = vmul.f32 %v806, %v465
  %v812 = vmul.f32 %v803, %v466
  %v813 = vmul.f32 %v807, %v467
  %v814 = vmul.f32 %v804, %v468
  %v815 = vmul.f32 %v808, %v469
  %v816 = vmul.f32 %v805, %v470
  %v817 = vmul.f32 %v809, %v471
  %v818 = vadd.f32 %v777, %v810
  %v819 = vadd.f32 %v778, %v811
  %v820 = vadd.f32 %v779, %v812
  %v821 = vadd.f32 %v780, %v813
  %v822 = vadd.f32 %v781, %v814
  %v823 = vadd.f32 %v782, %v815
  %v824 = vadd.f32 %v783, %v816
  %v825 = vadd.f32 %v784, %v817
  %826 = vset.pattern.permute.xlu0 28
  %827 = vperm.xlu0 %826, %v16
  %v828 = vpop.permute.xlu0 %827
  %830 = vset.pattern.permute.xlu0 28
  %831 = vperm.xlu0 %830, %v17
  %v832 = vpop.permute.xlu0 %831
  %834 = vset.pattern.permute.xlu0 28
  %835 = vperm.xlu0 %834, %v18
  %v836 = vpop.permute.xlu0 %835
  %838 = vset.pattern.permute.xlu0 28
  %839 = vperm.xlu0 %838, %v19
  %v840 = vpop.permute.xlu0 %839
  %v842 = vmul.f32 %v818, %v828
  %v843 = vmul.f32 %v819, %v828
  %v844 = vmul.f32 %v820, %v832
  %v845 = vmul.f32 %v821, %v832
  %v846 = vmul.f32 %v822, %v836
  %v847 = vmul.f32 %v823, %v836
  %v848 = vmul.f32 %v824, %v840
  %v849 = vmul.f32 %v825, %v840
  %850 = vset.pattern.permute.xlu0 29
  %851 = vperm.xlu0 %850, %v16
  %v852 = vpop.permute.xlu0 %851
  %854 = vset.pattern.permute.xlu0 29
  %855 = vperm.xlu0 %854, %v17
  %v856 = vpop.permute.xlu0 %855
  %858 = vset.pattern.permute.xlu0 29
  %859 = vperm.xlu0 %858, %v18
  %v860 = vpop.permute.xlu0 %859
  %862 = vset.pattern.permute.xlu0 29
  %863 = vperm.xlu0 %862, %v19
  %v864 = vpop.permute.xlu0 %863
  %v866 = vadd.f32 %v842, %v852
  %v867 = vadd.f32 %v843, %v852
  %v868 = vadd.f32 %v844, %v856
  %v869 = vadd.f32 %v845, %v856
  %v870 = vadd.f32 %v846, %v860
  %v871 = vadd.f32 %v847, %v860
  %v872 = vadd.f32 %v848, %v864
  %v873 = vadd.f32 %v849, %v864
  %v874 = vadd.f32 %v866, 3.0
  %v875 = vadd.f32 %v867, 3.0
  %v876 = vadd.f32 %v868, 3.0
  %v877 = vadd.f32 %v869, 3.0
  %v878 = vadd.f32 %v870, 3.0
  %v879 = vadd.f32 %v871, 3.0
  %v880 = vadd.f32 %v872, 3.0
  %v881 = vadd.f32 %v873, 3.0
  %v882 = vmax.f32 %v874, 0.0
  %v883 = vmax.f32 %v875, 0.0
  %v884 = vmax.f32 %v876, 0.0
  %v885 = vmax.f32 %v877, 0.0
  %v886 = vmax.f32 %v878, 0.0
  %v887 = vmax.f32 %v879, 0.0
  %v888 = vmax.f32 %v880, 0.0
  %v889 = vmax.f32 %v881, 0.0
  %v890 = vmin.f32 %v882, 6.0
  %v891 = vmin.f32 %v883, 6.0
  %v892 = vmin.f32 %v884, 6.0
  %v893 = vmin.f32 %v885, 6.0
  %v894 = vmin.f32 %v886, 6.0
  %v895 = vmin.f32 %v887, 6.0
  %v896 = vmin.f32 %v888, 6.0
  %v897 = vmin.f32 %v889, 6.0
  %v898 = vmul.f32 %v890, %v199
  %v899 = vmul.f32 %v891, %v199
  %v900 = vmul.f32 %v892, %v199
  %v901 = vmul.f32 %v893, %v199
  %v902 = vmul.f32 %v894, %v199
  %v903 = vmul.f32 %v895, %v199
  %v904 = vmul.f32 %v896, %v199
  %v905 = vmul.f32 %v897, %v199
  %v906 = vmul.f32 %v866, %v898
  %v907 = vmul.f32 %v867, %v899
  %v908 = vmul.f32 %v868, %v900
  %v909 = vmul.f32 %v869, %v901
  %v910 = vmul.f32 %v870, %v902
  %v911 = vmul.f32 %v871, %v903
  %v912 = vmul.f32 %v872, %v904
  %v913 = vmul.f32 %v873, %v905
  %914 = vset.pattern.permute.xlu0 17
  %915 = vperm.xlu0 %914, %v16
  %v916 = vpop.permute.xlu0 %915
  %918 = vset.pattern.permute.xlu0 17
  %919 = vperm.xlu0 %918, %v17
  %v920 = vpop.permute.xlu0 %919
  %922 = vset.pattern.permute.xlu0 17
  %923 = vperm.xlu0 %922, %v18
  %v924 = vpop.permute.xlu0 %923
  %926 = vset.pattern.permute.xlu0 17
  %927 = vperm.xlu0 %926, %v19
  %v928 = vpop.permute.xlu0 %927
  %v930 = vmul.f32 %v916, %v235
  %v931 = vmul.f32 %v916, %v239
  %v932 = vmul.f32 %v920, %v235
  %v933 = vmul.f32 %v920, %v239
  %v934 = vmul.f32 %v924, %v235
  %v935 = vmul.f32 %v924, %v239
  %v936 = vmul.f32 %v928, %v235
  %v937 = vmul.f32 %v928, %v239
  %938 = vset.pattern.permute.xlu0 18
  %939 = vperm.xlu0 %938, %v16
  %v940 = vpop.permute.xlu0 %939
  %942 = vset.pattern.permute.xlu0 18
  %943 = vperm.xlu0 %942, %v17
  %v944 = vpop.permute.xlu0 %943
  %946 = vset.pattern.permute.xlu0 18
  %947 = vperm.xlu0 %946, %v18
  %v948 = vpop.permute.xlu0 %947
  %950 = vset.pattern.permute.xlu0 18
  %951 = vperm.xlu0 %950, %v19
  %v952 = vpop.permute.xlu0 %951
  %v954 = vmul.f32 %v940, %v267
  %v955 = vmul.f32 %v940, %v271
  %v956 = vmul.f32 %v944, %v267
  %v957 = vmul.f32 %v944, %v271
  %v958 = vmul.f32 %v948, %v267
  %v959 = vmul.f32 %v948, %v271
  %v960 = vmul.f32 %v952, %v267
  %v961 = vmul.f32 %v952, %v271
  %962 = vset.pattern.permute.xlu0 19
  %963 = vperm.xlu0 %962, %v16
  %v964 = vpop.permute.xlu0 %963
  %966 = vset.pattern.permute.xlu0 19
  %967 = vperm.xlu0 %966, %v17
  %v968 = vpop.permute.xlu0 %967
  %970 = vset.pattern.permute.xlu0 19
  %971 = vperm.xlu0 %970, %v18
  %v972 = vpop.permute.xlu0 %971
  %974 = vset.pattern.permute.xlu0 19
  %975 = vperm.xlu0 %974, %v19
  %v976 = vpop.permute.xlu0 %975
  %v978 = vmul.f32 %v964, %v299
  %v979 = vmul.f32 %v964, %v303
  %v980 = vmul.f32 %v968, %v299
  %v981 = vmul.f32 %v968, %v303
  %v982 = vmul.f32 %v972, %v299
  %v983 = vmul.f32 %v972, %v303
  %v984 = vmul.f32 %v976, %v299
  %v985 = vmul.f32 %v976, %v303
  %986 = vset.pattern.permute.xlu0 20
  %987 = vperm.xlu0 %986, %v16
  %v988 = vpop.permute.xlu0 %987
  %990 = vset.pattern.permute.xlu0 20
  %991 = vperm.xlu0 %990, %v17
  %v992 = vpop.permute.xlu0 %991
  %994 = vset.pattern.permute.xlu0 20
  %995 = vperm.xlu0 %994, %v18
  %v996 = vpop.permute.xlu0 %995
  %998 = vset.pattern.permute.xlu0 20
  %999 = vperm.xlu0 %998, %v19
  %v1000 = vpop.permute.xlu0 %999
  %v1002 = vmul.f32 %v988, %v331
  %v1003 = vmul.f32 %v988, %v335
  %v1004 = vmul.f32 %v992, %v331
  %v1005 = vmul.f32 %v992, %v335
  %v1006 = vmul.f32 %v996, %v331
  %v1007 = vmul.f32 %v996, %v335
  %v1008 = vmul.f32 %v1000, %v331
  %v1009 = vmul.f32 %v1000, %v335
  %1010 = vset.pattern.permute.xlu0 22
  %1011 = vperm.xlu0 %1010, %v16
  %v1012 = vpop.permute.xlu0 %1011
  %1014 = vset.pattern.permute.xlu0 22
  %1015 = vperm.xlu0 %1014, %v17
  %v1016 = vpop.permute.xlu0 %1015
  %1018 = vset.pattern.permute.xlu0 22
  %1019 = vperm.xlu0 %1018, %v18
  %v1020 = vpop.permute.xlu0 %1019
  %1022 = vset.pattern.permute.xlu0 22
  %1023 = vperm.xlu0 %1022, %v19
  %v1024 = vpop.permute.xlu0 %1023
  %v1026 = vmul.f32 %v1012, %v363
  %v1027 = vmul.f32 %v1012, %v367
  %v1028 = vmul.f32 %v1016, %v363
  %v1029 = vmul.f32 %v1016, %v367
  %v1030 = vmul.f32 %v1020, %v363
  %v1031 = vmul.f32 %v1020, %v367
  %v1032 = vmul.f32 %v1024, %v363
  %v1033 = vmul.f32 %v1024, %v367
  %1034 = vset.pattern.permute.xlu0 23
  %1035 = vperm.xlu0 %1034, %v16
  %v1036 = vpop.permute.xlu0 %1035
  %1038 = vset.pattern.permute.xlu0 23
  %1039 = vperm.xlu0 %1038, %v17
  %v1040 = vpop.permute.xlu0 %1039
  %1042 = vset.pattern.permute.xlu0 23
  %1043 = vperm.xlu0 %1042, %v18
  %v1044 = vpop.permute.xlu0 %1043
  %1046 = vset.pattern.permute.xlu0 23
  %1047 = vperm.xlu0 %1046, %v19
  %v1048 = vpop.permute.xlu0 %1047
  %v1050 = vmul.f32 %v1036, %v395
  %v1051 = vmul.f32 %v1036, %v399
  %v1052 = vmul.f32 %v1040, %v395
  %v1053 = vmul.f32 %v1040, %v399
  %v1054 = vmul.f32 %v1044, %v395
  %v1055 = vmul.f32 %v1044, %v399
  %v1056 = vmul.f32 %v1048, %v395
  %v1057 = vmul.f32 %v1048, %v399
  %1058 = vset.pattern.permute.xlu0 24
  %1059 = vperm.xlu0 %1058, %v16
  %v1060 = vpop.permute.xlu0 %1059
  %1062 = vset.pattern.permute.xlu0 24
  %1063 = vperm.xlu0 %1062, %v17
  %v1064 = vpop.permute.xlu0 %1063
  %1066 = vset.pattern.permute.xlu0 24
  %1067 = vperm.xlu0 %1066, %v18
  %v1068 = vpop.permute.xlu0 %1067
  %1070 = vset.pattern.permute.xlu0 24
  %1071 = vperm.xlu0 %1070, %v19
  %v1072 = vpop.permute.xlu0 %1071
  %v1074 = vmul.f32 %v1060, %v427
  %v1075 = vmul.f32 %v1060, %v431
  %v1076 = vmul.f32 %v1064, %v427
  %v1077 = vmul.f32 %v1064, %v431
  %v1078 = vmul.f32 %v1068, %v427
  %v1079 = vmul.f32 %v1068, %v431
  %v1080 = vmul.f32 %v1072, %v427
  %v1081 = vmul.f32 %v1072, %v431
  %1082 = vset.pattern.permute.xlu0 25
  %1083 = vperm.xlu0 %1082, %v16
  %v1084 = vpop.permute.xlu0 %1083
  %1086 = vset.pattern.permute.xlu0 25
  %1087 = vperm.xlu0 %1086, %v17
  %v1088 = vpop.permute.xlu0 %1087
  %1090 = vset.pattern.permute.xlu0 25
  %1091 = vperm.xlu0 %1090, %v18
  %v1092 = vpop.permute.xlu0 %1091
  %1094 = vset.pattern.permute.xlu0 25
  %1095 = vperm.xlu0 %1094, %v19
  %v1096 = vpop.permute.xlu0 %1095
  %v1098 = vmul.f32 %v1084, %v459
  %v1099 = vmul.f32 %v1084, %v463
  %v1100 = vmul.f32 %v1088, %v459
  %v1101 = vmul.f32 %v1088, %v463
  %v1102 = vmul.f32 %v1092, %v459
  %v1103 = vmul.f32 %v1092, %v463
  %v1104 = vmul.f32 %v1096, %v459
  %v1105 = vmul.f32 %v1096, %v463
  %v1106 = vmul.f32 %v906, %v828
  %v1107 = vmul.f32 %v907, %v828
  %v1108 = vmul.f32 %v908, %v832
  %v1109 = vmul.f32 %v909, %v832
  %v1110 = vmul.f32 %v910, %v836
  %v1111 = vmul.f32 %v911, %v836
  %v1112 = vmul.f32 %v912, %v840
  %v1113 = vmul.f32 %v913, %v840
  %v1114 = vadd.f32 %v1106, %v852
  %v1115 = vadd.f32 %v1107, %v852
  %v1116 = vadd.f32 %v1108, %v856
  %v1117 = vadd.f32 %v1109, %v856
  %v1118 = vadd.f32 %v1110, %v860
  %v1119 = vadd.f32 %v1111, %v860
  %v1120 = vadd.f32 %v1112, %v864
  %v1121 = vadd.f32 %v1113, %v864
  %v1122 = vadd.f32 %v1114, 3.0
  %v1123 = vadd.f32 %v1115, 3.0
  %v1124 = vadd.f32 %v1116, 3.0
  %v1125 = vadd.f32 %v1117, 3.0
  %v1126 = vadd.f32 %v1118, 3.0
  %v1127 = vadd.f32 %v1119, 3.0
  %v1128 = vadd.f32 %v1120, 3.0
  %v1129 = vadd.f32 %v1121, 3.0
  %v1130 = vmax.f32 %v1122, 0.0
  %v1131 = vmax.f32 %v1123, 0.0
  %v1132 = vmax.f32 %v1124, 0.0
  %v1133 = vmax.f32 %v1125, 0.0
  %v1134 = vmax.f32 %v1126, 0.0
  %v1135 = vmax.f32 %v1127, 0.0
  %v1136 = vmax.f32 %v1128, 0.0
  %v1137 = vmax.f32 %v1129, 0.0
  %v1138 = vmin.f32 %v1130, 6.0
  %v1139 = vmin.f32 %v1131, 6.0
  %v1140 = vmin.f32 %v1132, 6.0
  %v1141 = vmin.f32 %v1133, 6.0
  %v1142 = vmin.f32 %v1134, 6.0
  %v1143 = vmin.f32 %v1135, 6.0
  %v1144 = vmin.f32 %v1136, 6.0
  %v1145 = vmin.f32 %v1137, 6.0
  %v1146 = vmul.f32 %v1138, %v199
  %v1147 = vmul.f32 %v1139, %v199
  %v1148 = vmul.f32 %v1140, %v199
  %v1149 = vmul.f32 %v1141, %v199
  %v1150 = vmul.f32 %v1142, %v199
  %v1151 = vmul.f32 %v1143, %v199
  %v1152 = vmul.f32 %v1144, %v199
  %v1153 = vmul.f32 %v1145, %v199
  %v1154 = vmul.f32 %v1114, %v1146
  %v1155 = vmul.f32 %v1115, %v1147
  %v1156 = vmul.f32 %v1116, %v1148
  %v1157 = vmul.f32 %v1117, %v1149
  %v1158 = vmul.f32 %v1118, %v1150
  %v1159 = vmul.f32 %v1119, %v1151
  %v1160 = vmul.f32 %v1120, %v1152
  %v1161 = vmul.f32 %v1121, %v1153
  %1162 = vset.pattern.permute.xlu0 21
  %1163 = vperm.xlu0 %1162, %v16
  %v1164 = vpop.permute.xlu0 %1163
  %1166 = vset.pattern.permute.xlu0 21
  %1167 = vperm.xlu0 %1166, %v17
  %v1168 = vpop.permute.xlu0 %1167
  %1170 = vset.pattern.permute.xlu0 21
  %1171 = vperm.xlu0 %1170, %v18
  %v1172 = vpop.permute.xlu0 %1171
  %1174 = vset.pattern.permute.xlu0 21
  %1175 = vperm.xlu0 %1174, %v19
  %v1176 = vpop.permute.xlu0 %1175
  %v1178 = vmul.f32 %v1154, %v1164
  %v1179 = vmul.f32 %v1155, %v1164
  %v1180 = vmul.f32 %v1156, %v1168
  %v1181 = vmul.f32 %v1157, %v1168
  %v1182 = vmul.f32 %v1158, %v1172
  %v1183 = vmul.f32 %v1159, %v1172
  %v1184 = vmul.f32 %v1160, %v1176
  %v1185 = vmul.f32 %v1161, %v1176
  %1186 = vrot.lane.b32.xlu0 %v1154, 17
  %v1187 = vpop.permute.xlu0 %1186
  %1188 = vrot.lane.b32.xlu0 %v1156, 17
  %v1189 = vpop.permute.xlu0 %1188
  %1190 = vrot.lane.b32.xlu0 %v1158, 17
  %v1191 = vpop.permute.xlu0 %1190
  %1192 = vrot.lane.b32.xlu0 %v1160, 17
  %v1193 = vpop.permute.xlu0 %1192
  %1194 = vrot.lane.b32.xlu0 %v1155, 17
  %v1195 = vpop.permute.xlu0 %1194
  %1196 = vrot.lane.b32.xlu0 %v1157, 17
  %v1197 = vpop.permute.xlu0 %1196
  %1198 = vrot.lane.b32.xlu0 %v1159, 17
  %v1199 = vpop.permute.xlu0 %1198
  %1200 = vrot.lane.b32.xlu0 %v1161, 17
  %v1201 = vpop.permute.xlu0 %1200
  %v1202 = vsel %vm514, %v1187, %v1195
  %v1203 = vsel %vm514, %v1189, %v1197
  %v1204 = vsel %vm514, %v1191, %v1199
  %v1205 = vsel %vm514, %v1193, %v1201
  %v1206 = vsel %vm514, %v1195, %v1187
  %v1207 = vsel %vm514, %v1197, %v1189
  %v1208 = vsel %vm514, %v1199, %v1191
  %v1209 = vsel %vm514, %v1201, %v1193
  %v1210 = vmul.f32 %v1206, %v930
  %v1211 = vmul.f32 %v1202, %v931
  %v1212 = vmul.f32 %v1207, %v932
  %v1213 = vmul.f32 %v1203, %v933
  %v1214 = vmul.f32 %v1208, %v934
  %v1215 = vmul.f32 %v1204, %v935
  %v1216 = vmul.f32 %v1209, %v936
  %v1217 = vmul.f32 %v1205, %v937
  %v1218 = vadd.f32 %v1178, %v1210
  %v1219 = vadd.f32 %v1179, %v1211
  %v1220 = vadd.f32 %v1180, %v1212
  %v1221 = vadd.f32 %v1181, %v1213
  %v1222 = vadd.f32 %v1182, %v1214
  %v1223 = vadd.f32 %v1183, %v1215
  %v1224 = vadd.f32 %v1184, %v1216
  %v1225 = vadd.f32 %v1185, %v1217
  %1226 = vrot.lane.b32.xlu0 %v1154, 16
  %v1227 = vpop.permute.xlu0 %1226
  %1228 = vrot.lane.b32.xlu0 %v1156, 16
  %v1229 = vpop.permute.xlu0 %1228
  %1230 = vrot.lane.b32.xlu0 %v1158, 16
  %v1231 = vpop.permute.xlu0 %1230
  %1232 = vrot.lane.b32.xlu0 %v1160, 16
  %v1233 = vpop.permute.xlu0 %1232
  %1234 = vrot.lane.b32.xlu0 %v1155, 16
  %v1235 = vpop.permute.xlu0 %1234
  %1236 = vrot.lane.b32.xlu0 %v1157, 16
  %v1237 = vpop.permute.xlu0 %1236
  %1238 = vrot.lane.b32.xlu0 %v1159, 16
  %v1239 = vpop.permute.xlu0 %1238
  %1240 = vrot.lane.b32.xlu0 %v1161, 16
  %v1241 = vpop.permute.xlu0 %1240
  %v1242 = vsel %vm555, %v1227, %v1235
  %v1243 = vsel %vm555, %v1229, %v1237
  %v1244 = vsel %vm555, %v1231, %v1239
  %v1245 = vsel %vm555, %v1233, %v1241
  %v1246 = vsel %vm555, %v1235, %v1227
  %v1247 = vsel %vm555, %v1237, %v1229
  %v1248 = vsel %vm555, %v1239, %v1231
  %v1249 = vsel %vm555, %v1241, %v1233
  %v1250 = vmul.f32 %v1246, %v954
  %v1251 = vmul.f32 %v1242, %v955
  %v1252 = vmul.f32 %v1247, %v956
  %v1253 = vmul.f32 %v1243, %v957
  %v1254 = vmul.f32 %v1248, %v958
  %v1255 = vmul.f32 %v1244, %v959
  %v1256 = vmul.f32 %v1249, %v960
  %v1257 = vmul.f32 %v1245, %v961
  %v1258 = vadd.f32 %v1218, %v1250
  %v1259 = vadd.f32 %v1219, %v1251
  %v1260 = vadd.f32 %v1220, %v1252
  %v1261 = vadd.f32 %v1221, %v1253
  %v1262 = vadd.f32 %v1222, %v1254
  %v1263 = vadd.f32 %v1223, %v1255
  %v1264 = vadd.f32 %v1224, %v1256
  %v1265 = vadd.f32 %v1225, %v1257
  %1266 = vrot.lane.b32.xlu0 %v1154, 15
  %v1267 = vpop.permute.xlu0 %1266
  %1268 = vrot.lane.b32.xlu0 %v1156, 15
  %v1269 = vpop.permute.xlu0 %1268
  %1270 = vrot.lane.b32.xlu0 %v1158, 15
  %v1271 = vpop.permute.xlu0 %1270
  %1272 = vrot.lane.b32.xlu0 %v1160, 15
  %v1273 = vpop.permute.xlu0 %1272
  %1274 = vrot.lane.b32.xlu0 %v1155, 15
  %v1275 = vpop.permute.xlu0 %1274
  %1276 = vrot.lane.b32.xlu0 %v1157, 15
  %v1277 = vpop.permute.xlu0 %1276
  %1278 = vrot.lane.b32.xlu0 %v1159, 15
  %v1279 = vpop.permute.xlu0 %1278
  %1280 = vrot.lane.b32.xlu0 %v1161, 15
  %v1281 = vpop.permute.xlu0 %1280
  %v1282 = vsel %vm596, %v1267, %v1275
  %v1283 = vsel %vm596, %v1269, %v1277
  %v1284 = vsel %vm596, %v1271, %v1279
  %v1285 = vsel %vm596, %v1273, %v1281
  %v1286 = vsel %vm596, %v1275, %v1267
  %v1287 = vsel %vm596, %v1277, %v1269
  %v1288 = vsel %vm596, %v1279, %v1271
  %v1289 = vsel %vm596, %v1281, %v1273
  %v1290 = vmul.f32 %v1286, %v978
  %v1291 = vmul.f32 %v1282, %v979
  %v1292 = vmul.f32 %v1287, %v980
  %v1293 = vmul.f32 %v1283, %v981
  %v1294 = vmul.f32 %v1288, %v982
  %v1295 = vmul.f32 %v1284, %v983
  %v1296 = vmul.f32 %v1289, %v984
  %v1297 = vmul.f32 %v1285, %v985
  %v1298 = vadd.f32 %v1258, %v1290
  %v1299 = vadd.f32 %v1259, %v1291
  %v1300 = vadd.f32 %v1260, %v1292
  %v1301 = vadd.f32 %v1261, %v1293
  %v1302 = vadd.f32 %v1262, %v1294
  %v1303 = vadd.f32 %v1263, %v1295
  %v1304 = vadd.f32 %v1264, %v1296
  %v1305 = vadd.f32 %v1265, %v1297
  %1306 = vrot.lane.b32.xlu0 %v1154, 1
  %v1307 = vpop.permute.xlu0 %1306
  %1308 = vrot.lane.b32.xlu0 %v1156, 1
  %v1309 = vpop.permute.xlu0 %1308
  %1310 = vrot.lane.b32.xlu0 %v1158, 1
  %v1311 = vpop.permute.xlu0 %1310
  %1312 = vrot.lane.b32.xlu0 %v1160, 1
  %v1313 = vpop.permute.xlu0 %1312
  %1314 = vrot.lane.b32.xlu0 %v1155, 1
  %v1315 = vpop.permute.xlu0 %1314
  %1316 = vrot.lane.b32.xlu0 %v1157, 1
  %v1317 = vpop.permute.xlu0 %1316
  %1318 = vrot.lane.b32.xlu0 %v1159, 1
  %v1319 = vpop.permute.xlu0 %1318
  %1320 = vrot.lane.b32.xlu0 %v1161, 1
  %v1321 = vpop.permute.xlu0 %1320
  %v1322 = vsel %vm637, %v1307, %v1315
  %v1323 = vsel %vm637, %v1309, %v1317
  %v1324 = vsel %vm637, %v1311, %v1319
  %v1325 = vsel %vm637, %v1313, %v1321
  %v1326 = vsel %vm637, %v1315, %v1307
  %v1327 = vsel %vm637, %v1317, %v1309
  %v1328 = vsel %vm637, %v1319, %v1311
  %v1329 = vsel %vm637, %v1321, %v1313
  %v1330 = vmul.f32 %v1326, %v1002
  %v1331 = vmul.f32 %v1322, %v1003
  %v1332 = vmul.f32 %v1327, %v1004
  %v1333 = vmul.f32 %v1323, %v1005
  %v1334 = vmul.f32 %v1328, %v1006
  %v1335 = vmul.f32 %v1324, %v1007
  %v1336 = vmul.f32 %v1329, %v1008
  %v1337 = vmul.f32 %v1325, %v1009
  %v1338 = vadd.f32 %v1298, %v1330
  %v1339 = vadd.f32 %v1299, %v1331
  %v1340 = vadd.f32 %v1300, %v1332
  %v1341 = vadd.f32 %v1301, %v1333
  %v1342 = vadd.f32 %v1302, %v1334
  %v1343 = vadd.f32 %v1303, %v1335
  %v1344 = vadd.f32 %v1304, %v1336
  %v1345 = vadd.f32 %v1305, %v1337
  %1346 = vrot.lane.b32.xlu0 %v1154, 127
  %v1347 = vpop.permute.xlu0 %1346
  %1348 = vrot.lane.b32.xlu0 %v1156, 127
  %v1349 = vpop.permute.xlu0 %1348
  %1350 = vrot.lane.b32.xlu0 %v1158, 127
  %v1351 = vpop.permute.xlu0 %1350
  %1352 = vrot.lane.b32.xlu0 %v1160, 127
  %v1353 = vpop.permute.xlu0 %1352
  %1354 = vrot.lane.b32.xlu0 %v1155, 127
  %v1355 = vpop.permute.xlu0 %1354
  %1356 = vrot.lane.b32.xlu0 %v1157, 127
  %v1357 = vpop.permute.xlu0 %1356
  %1358 = vrot.lane.b32.xlu0 %v1159, 127
  %v1359 = vpop.permute.xlu0 %1358
  %1360 = vrot.lane.b32.xlu0 %v1161, 127
  %v1361 = vpop.permute.xlu0 %1360
  %v1362 = vsel %vm678, %v1347, %v1355
  %v1363 = vsel %vm678, %v1349, %v1357
  %v1364 = vsel %vm678, %v1351, %v1359
  %v1365 = vsel %vm678, %v1353, %v1361
  %v1366 = vsel %vm678, %v1355, %v1347
  %v1367 = vsel %vm678, %v1357, %v1349
  %v1368 = vsel %vm678, %v1359, %v1351
  %v1369 = vsel %vm678, %v1361, %v1353
  %v1370 = vmul.f32 %v1362, %v1026
  %v1371 = vmul.f32 %v1366, %v1027
  %v1372 = vmul.f32 %v1363, %v1028
  %v1373 = vmul.f32 %v1367, %v1029
  %v1374 = vmul.f32 %v1364, %v1030
  %v1375 = vmul.f32 %v1368, %v1031
  %v1376 = vmul.f32 %v1365, %v1032
  %v1377 = vmul.f32 %v1369, %v1033
  %v1378 = vadd.f32 %v1338, %v1370
  %v1379 = vadd.f32 %v1339, %v1371
  %v1380 = vadd.f32 %v1340, %v1372
  %v1381 = vadd.f32 %v1341, %v1373
  %v1382 = vadd.f32 %v1342, %v1374
  %v1383 = vadd.f32 %v1343, %v1375
  %v1384 = vadd.f32 %v1344, %v1376
  %v1385 = vadd.f32 %v1345, %v1377
  %1386 = vrot.lane.b32.xlu0 %v1154, 113
  %v1387 = vpop.permute.xlu0 %1386
  %1388 = vrot.lane.b32.xlu0 %v1156, 113
  %v1389 = vpop.permute.xlu0 %1388
  %1390 = vrot.lane.b32.xlu0 %v1158, 113
  %v1391 = vpop.permute.xlu0 %1390
  %1392 = vrot.lane.b32.xlu0 %v1160, 113
  %v1393 = vpop.permute.xlu0 %1392
  %1394 = vrot.lane.b32.xlu0 %v1155, 113
  %v1395 = vpop.permute.xlu0 %1394
  %1396 = vrot.lane.b32.xlu0 %v1157, 113
  %v1397 = vpop.permute.xlu0 %1396
  %1398 = vrot.lane.b32.xlu0 %v1159, 113
  %v1399 = vpop.permute.xlu0 %1398
  %1400 = vrot.lane.b32.xlu0 %v1161, 113
  %v1401 = vpop.permute.xlu0 %1400
  %v1402 = vsel %vm719, %v1387, %v1395
  %v1403 = vsel %vm719, %v1389, %v1397
  %v1404 = vsel %vm719, %v1391, %v1399
  %v1405 = vsel %vm719, %v1393, %v1401
  %v1406 = vsel %vm719, %v1395, %v1387
  %v1407 = vsel %vm719, %v1397, %v1389
  %v1408 = vsel %vm719, %v1399, %v1391
  %v1409 = vsel %vm719, %v1401, %v1393
  %v1410 = vmul.f32 %v1402, %v1050
  %v1411 = vmul.f32 %v1406, %v1051
  %v1412 = vmul.f32 %v1403, %v1052
  %v1413 = vmul.f32 %v1407, %v1053
  %v1414 = vmul.f32 %v1404, %v1054
  %v1415 = vmul.f32 %v1408, %v1055
  %v1416 = vmul.f32 %v1405, %v1056
  %v1417 = vmul.f32 %v1409, %v1057
  %v1418 = vadd.f32 %v1378, %v1410
  %v1419 = vadd.f32 %v1379, %v1411
  %v1420 = vadd.f32 %v1380, %v1412
  %v1421 = vadd.f32 %v1381, %v1413
  %v1422 = vadd.f32 %v1382, %v1414
  %v1423 = vadd.f32 %v1383, %v1415
  %v1424 = vadd.f32 %v1384, %v1416
  %v1425 = vadd.f32 %v1385, %v1417
  %1426 = vrot.lane.b32.xlu0 %v1154, 112
  %v1427 = vpop.permute.xlu0 %1426
  %1428 = vrot.lane.b32.xlu0 %v1156, 112
  %v1429 = vpop.permute.xlu0 %1428
  %1430 = vrot.lane.b32.xlu0 %v1158, 112
  %v1431 = vpop.permute.xlu0 %1430
  %1432 = vrot.lane.b32.xlu0 %v1160, 112
  %v1433 = vpop.permute.xlu0 %1432
  %1434 = vrot.lane.b32.xlu0 %v1155, 112
  %v1435 = vpop.permute.xlu0 %1434
  %1436 = vrot.lane.b32.xlu0 %v1157, 112
  %v1437 = vpop.permute.xlu0 %1436
  %1438 = vrot.lane.b32.xlu0 %v1159, 112
  %v1439 = vpop.permute.xlu0 %1438
  %1440 = vrot.lane.b32.xlu0 %v1161, 112
  %v1441 = vpop.permute.xlu0 %1440
  %v1442 = vsel %vm760, %v1427, %v1435
  %v1443 = vsel %vm760, %v1429, %v1437
  %v1444 = vsel %vm760, %v1431, %v1439
  %v1445 = vsel %vm760, %v1433, %v1441
  %v1446 = vsel %vm760, %v1435, %v1427
  %v1447 = vsel %vm760, %v1437, %v1429
  %v1448 = vsel %vm760, %v1439, %v1431
  %v1449 = vsel %vm760, %v1441, %v1433
  %v1450 = vmul.f32 %v1442, %v1074
  %v1451 = vmul.f32 %v1446, %v1075
  %v1452 = vmul.f32 %v1443, %v1076
  %v1453 = vmul.f32 %v1447, %v1077
  %v1454 = vmul.f32 %v1444, %v1078
  %v1455 = vmul.f32 %v1448, %v1079
  %v1456 = vmul.f32 %v1445, %v1080
  %v1457 = vmul.f32 %v1449, %v1081
  %v1458 = vadd.f32 %v1418, %v1450
  %v1459 = vadd.f32 %v1419, %v1451
  %v1460 = vadd.f32 %v1420, %v1452
  %v1461 = vadd.f32 %v1421, %v1453
  %v1462 = vadd.f32 %v1422, %v1454
  %v1463 = vadd.f32 %v1423, %v1455
  %v1464 = vadd.f32 %v1424, %v1456
  %v1465 = vadd.f32 %v1425, %v1457
  %1466 = vrot.lane.b32.xlu0 %v1154, 111
  %v1467 = vpop.permute.xlu0 %1466
  %1468 = vrot.lane.b32.xlu0 %v1156, 111
  %v1469 = vpop.permute.xlu0 %1468
  %1470 = vrot.lane.b32.xlu0 %v1158, 111
  %v1471 = vpop.permute.xlu0 %1470
  %1472 = vrot.lane.b32.xlu0 %v1160, 111
  %v1473 = vpop.permute.xlu0 %1472
  %1474 = vrot.lane.b32.xlu0 %v1155, 111
  %v1475 = vpop.permute.xlu0 %1474
  %1476 = vrot.lane.b32.xlu0 %v1157, 111
  %v1477 = vpop.permute.xlu0 %1476
  %1478 = vrot.lane.b32.xlu0 %v1159, 111
  %v1479 = vpop.permute.xlu0 %1478
  %1480 = vrot.lane.b32.xlu0 %v1161, 111
  %v1481 = vpop.permute.xlu0 %1480
  %v1482 = vsel %vm801, %v1467, %v1475
  %v1483 = vsel %vm801, %v1469, %v1477
  %v1484 = vsel %vm801, %v1471, %v1479
  %v1485 = vsel %vm801, %v1473, %v1481
  %v1486 = vsel %vm801, %v1475, %v1467
  %v1487 = vsel %vm801, %v1477, %v1469
  %v1488 = vsel %vm801, %v1479, %v1471
  %v1489 = vsel %vm801, %v1481, %v1473
  %v1490 = vmul.f32 %v1482, %v1098
  %v1491 = vmul.f32 %v1486, %v1099
  %v1492 = vmul.f32 %v1483, %v1100
  %v1493 = vmul.f32 %v1487, %v1101
  %v1494 = vmul.f32 %v1484, %v1102
  %v1495 = vmul.f32 %v1488, %v1103
  %v1496 = vmul.f32 %v1485, %v1104
  %v1497 = vmul.f32 %v1489, %v1105
  %v1498 = vadd.f32 %v1458, %v1490
  %v1499 = vadd.f32 %v1459, %v1491
  %v1500 = vadd.f32 %v1460, %v1492
  %v1501 = vadd.f32 %v1461, %v1493
  %v1502 = vadd.f32 %v1462, %v1494
  %v1503 = vadd.f32 %v1463, %v1495
  %v1504 = vadd.f32 %v1464, %v1496
  %v1505 = vadd.f32 %v1465, %v1497
  %v1506 = vadd.f32 %v906, %v1498
  %v1507 = vadd.f32 %v907, %v1499
  %v1508 = vadd.f32 %v908, %v1500
  %v1509 = vadd.f32 %v909, %v1501
  %v1510 = vadd.f32 %v910, %v1502
  %v1511 = vadd.f32 %v911, %v1503
  %v1512 = vadd.f32 %v912, %v1504
  %v1513 = vadd.f32 %v913, %v1505
  %v1514 = vadd.f32 %v1498, 3.0
  %v1515 = vadd.f32 %v1499, 3.0
  %v1516 = vadd.f32 %v1500, 3.0
  %v1517 = vadd.f32 %v1501, 3.0
  %v1518 = vadd.f32 %v1502, 3.0
  %v1519 = vadd.f32 %v1503, 3.0
  %v1520 = vadd.f32 %v1504, 3.0
  %v1521 = vadd.f32 %v1505, 3.0
  %v1522 = vmax.f32 %v1514, 0.0
  %v1523 = vmax.f32 %v1515, 0.0
  %v1524 = vmax.f32 %v1516, 0.0
  %v1525 = vmax.f32 %v1517, 0.0
  %v1526 = vmax.f32 %v1518, 0.0
  %v1527 = vmax.f32 %v1519, 0.0
  %v1528 = vmax.f32 %v1520, 0.0
  %v1529 = vmax.f32 %v1521, 0.0
  %v1530 = vmin.f32 %v1522, 6.0
  %v1531 = vmin.f32 %v1523, 6.0
  %v1532 = vmin.f32 %v1524, 6.0
  %v1533 = vmin.f32 %v1525, 6.0
  %v1534 = vmin.f32 %v1526, 6.0
  %v1535 = vmin.f32 %v1527, 6.0
  %v1536 = vmin.f32 %v1528, 6.0
  %v1537 = vmin.f32 %v1529, 6.0
  %v1538 = vmul.f32 %v1530, %v199
  %v1539 = vmul.f32 %v1531, %v199
  %v1540 = vmul.f32 %v1532, %v199
  %v1541 = vmul.f32 %v1533, %v199
  %v1542 = vmul.f32 %v1534, %v199
  %v1543 = vmul.f32 %v1535, %v199
  %v1544 = vmul.f32 %v1536, %v199
  %v1545 = vmul.f32 %v1537, %v199
  %v1546 = vmul.f32 %v1498, %v1538
  %v1547 = vmul.f32 %v1499, %v1539
  %v1548 = vmul.f32 %v1500, %v1540
  %v1549 = vmul.f32 %v1501, %v1541
  %v1550 = vmul.f32 %v1502, %v1542
  %v1551 = vmul.f32 %v1503, %v1543
  %v1552 = vmul.f32 %v1504, %v1544
  %v1553 = vmul.f32 %v1505, %v1545
  %v1554 = vmul.f32 %v1546, %v1164
  %v1555 = vmul.f32 %v1547, %v1164
  %v1556 = vmul.f32 %v1548, %v1168
  %v1557 = vmul.f32 %v1549, %v1168
  %v1558 = vmul.f32 %v1550, %v1172
  %v1559 = vmul.f32 %v1551, %v1172
  %v1560 = vmul.f32 %v1552, %v1176
  %v1561 = vmul.f32 %v1553, %v1176
  %1562 = vrot.lane.b32.xlu0 %v1546, 17
  %v1563 = vpop.permute.xlu0 %1562
  %1564 = vrot.lane.b32.xlu0 %v1548, 17
  %v1565 = vpop.permute.xlu0 %1564
  %1566 = vrot.lane.b32.xlu0 %v1550, 17
  %v1567 = vpop.permute.xlu0 %1566
  %1568 = vrot.lane.b32.xlu0 %v1552, 17
  %v1569 = vpop.permute.xlu0 %1568
  %1570 = vrot.lane.b32.xlu0 %v1547, 17
  %v1571 = vpop.permute.xlu0 %1570
  %1572 = vrot.lane.b32.xlu0 %v1549, 17
  %v1573 = vpop.permute.xlu0 %1572
  %1574 = vrot.lane.b32.xlu0 %v1551, 17
  %v1575 = vpop.permute.xlu0 %1574
  %1576 = vrot.lane.b32.xlu0 %v1553, 17
  %v1577 = vpop.permute.xlu0 %1576
  %v1578 = vsel %vm514, %v1563, %v1571
  %v1579 = vsel %vm514, %v1565, %v1573
  %v1580 = vsel %vm514, %v1567, %v1575
  %v1581 = vsel %vm514, %v1569, %v1577
  %v1582 = vsel %vm514, %v1571, %v1563
  %v1583 = vsel %vm514, %v1573, %v1565
  %v1584 = vsel %vm514, %v1575, %v1567
  %v1585 = vsel %vm514, %v1577, %v1569
  %v1586 = vmul.f32 %v1582, %v930
  %v1587 = vmul.f32 %v1578, %v931
  %v1588 = vmul.f32 %v1583, %v932
  %v1589 = vmul.f32 %v1579, %v933
  %v1590 = vmul.f32 %v1584, %v934
  %v1591 = vmul.f32 %v1580, %v935
  %v1592 = vmul.f32 %v1585, %v936
  %v1593 = vmul.f32 %v1581, %v937
  %v1594 = vadd.f32 %v1554, %v1586
  %v1595 = vadd.f32 %v1555, %v1587
  %v1596 = vadd.f32 %v1556, %v1588
  %v1597 = vadd.f32 %v1557, %v1589
  %v1598 = vadd.f32 %v1558, %v1590
  %v1599 = vadd.f32 %v1559, %v1591
  %v1600 = vadd.f32 %v1560, %v1592
  %v1601 = vadd.f32 %v1561, %v1593
  %1602 = vrot.lane.b32.xlu0 %v1546, 16
  %v1603 = vpop.permute.xlu0 %1602
  %1604 = vrot.lane.b32.xlu0 %v1548, 16
  %v1605 = vpop.permute.xlu0 %1604
  %1606 = vrot.lane.b32.xlu0 %v1550, 16
  %v1607 = vpop.permute.xlu0 %1606
  %1608 = vrot.lane.b32.xlu0 %v1552, 16
  %v1609 = vpop.permute.xlu0 %1608
  %1610 = vrot.lane.b32.xlu0 %v1547, 16
  %v1611 = vpop.permute.xlu0 %1610
  %1612 = vrot.lane.b32.xlu0 %v1549, 16
  %v1613 = vpop.permute.xlu0 %1612
  %1614 = vrot.lane.b32.xlu0 %v1551, 16
  %v1615 = vpop.permute.xlu0 %1614
  %1616 = vrot.lane.b32.xlu0 %v1553, 16
  %v1617 = vpop.permute.xlu0 %1616
  %v1618 = vsel %vm555, %v1603, %v1611
  %v1619 = vsel %vm555, %v1605, %v1613
  %v1620 = vsel %vm555, %v1607, %v1615
  %v1621 = vsel %vm555, %v1609, %v1617
  %v1622 = vsel %vm555, %v1611, %v1603
  %v1623 = vsel %vm555, %v1613, %v1605
  %v1624 = vsel %vm555, %v1615, %v1607
  %v1625 = vsel %vm555, %v1617, %v1609
  %v1626 = vmul.f32 %v1622, %v954
  %v1627 = vmul.f32 %v1618, %v955
  %v1628 = vmul.f32 %v1623, %v956
  %v1629 = vmul.f32 %v1619, %v957
  %v1630 = vmul.f32 %v1624, %v958
  %v1631 = vmul.f32 %v1620, %v959
  %v1632 = vmul.f32 %v1625, %v960
  %v1633 = vmul.f32 %v1621, %v961
  %v1634 = vadd.f32 %v1594, %v1626
  %v1635 = vadd.f32 %v1595, %v1627
  %v1636 = vadd.f32 %v1596, %v1628
  %v1637 = vadd.f32 %v1597, %v1629
  %v1638 = vadd.f32 %v1598, %v1630
  %v1639 = vadd.f32 %v1599, %v1631
  %v1640 = vadd.f32 %v1600, %v1632
  %v1641 = vadd.f32 %v1601, %v1633
  %1642 = vrot.lane.b32.xlu0 %v1546, 15
  %v1643 = vpop.permute.xlu0 %1642
  %1644 = vrot.lane.b32.xlu0 %v1548, 15
  %v1645 = vpop.permute.xlu0 %1644
  %1646 = vrot.lane.b32.xlu0 %v1550, 15
  %v1647 = vpop.permute.xlu0 %1646
  %1648 = vrot.lane.b32.xlu0 %v1552, 15
  %v1649 = vpop.permute.xlu0 %1648
  %1650 = vrot.lane.b32.xlu0 %v1547, 15
  %v1651 = vpop.permute.xlu0 %1650
  %1652 = vrot.lane.b32.xlu0 %v1549, 15
  %v1653 = vpop.permute.xlu0 %1652
  %1654 = vrot.lane.b32.xlu0 %v1551, 15
  %v1655 = vpop.permute.xlu0 %1654
  %1656 = vrot.lane.b32.xlu0 %v1553, 15
  %v1657 = vpop.permute.xlu0 %1656
  %v1658 = vsel %vm596, %v1643, %v1651
  %v1659 = vsel %vm596, %v1645, %v1653
  %v1660 = vsel %vm596, %v1647, %v1655
  %v1661 = vsel %vm596, %v1649, %v1657
  %v1662 = vsel %vm596, %v1651, %v1643
  %v1663 = vsel %vm596, %v1653, %v1645
  %v1664 = vsel %vm596, %v1655, %v1647
  %v1665 = vsel %vm596, %v1657, %v1649
  %v1666 = vmul.f32 %v1662, %v978
  %v1667 = vmul.f32 %v1658, %v979
  %v1668 = vmul.f32 %v1663, %v980
  %v1669 = vmul.f32 %v1659, %v981
  %v1670 = vmul.f32 %v1664, %v982
  %v1671 = vmul.f32 %v1660, %v983
  %v1672 = vmul.f32 %v1665, %v984
  %v1673 = vmul.f32 %v1661, %v985
  %v1674 = vadd.f32 %v1634, %v1666
  %v1675 = vadd.f32 %v1635, %v1667
  %v1676 = vadd.f32 %v1636, %v1668
  %v1677 = vadd.f32 %v1637, %v1669
  %v1678 = vadd.f32 %v1638, %v1670
  %v1679 = vadd.f32 %v1639, %v1671
  %v1680 = vadd.f32 %v1640, %v1672
  %v1681 = vadd.f32 %v1641, %v1673
  %1682 = vrot.lane.b32.xlu0 %v1546, 1
  %v1683 = vpop.permute.xlu0 %1682
  %1684 = vrot.lane.b32.xlu0 %v1548, 1
  %v1685 = vpop.permute.xlu0 %1684
  %1686 = vrot.lane.b32.xlu0 %v1550, 1
  %v1687 = vpop.permute.xlu0 %1686
  %1688 = vrot.lane.b32.xlu0 %v1552, 1
  %v1689 = vpop.permute.xlu0 %1688
  %1690 = vrot.lane.b32.xlu0 %v1547, 1
  %v1691 = vpop.permute.xlu0 %1690
  %1692 = vrot.lane.b32.xlu0 %v1549, 1
  %v1693 = vpop.permute.xlu0 %1692
  %1694 = vrot.lane.b32.xlu0 %v1551, 1
  %v1695 = vpop.permute.xlu0 %1694
  %1696 = vrot.lane.b32.xlu0 %v1553, 1
  %v1697 = vpop.permute.xlu0 %1696
  %v1698 = vsel %vm637, %v1683, %v1691
  %v1699 = vsel %vm637, %v1685, %v1693
  %v1700 = vsel %vm637, %v1687, %v1695
  %v1701 = vsel %vm637, %v1689, %v1697
  %v1702 = vsel %vm637, %v1691, %v1683
  %v1703 = vsel %vm637, %v1693, %v1685
  %v1704 = vsel %vm637, %v1695, %v1687
  %v1705 = vsel %vm637, %v1697, %v1689
  %v1706 = vmul.f32 %v1702, %v1002
  %v1707 = vmul.f32 %v1698, %v1003
  %v1708 = vmul.f32 %v1703, %v1004
  %v1709 = vmul.f32 %v1699, %v1005
  %v1710 = vmul.f32 %v1704, %v1006
  %v1711 = vmul.f32 %v1700, %v1007
  %v1712 = vmul.f32 %v1705, %v1008
  %v1713 = vmul.f32 %v1701, %v1009
  %v1714 = vadd.f32 %v1674, %v1706
  %v1715 = vadd.f32 %v1675, %v1707
  %v1716 = vadd.f32 %v1676, %v1708
  %v1717 = vadd.f32 %v1677, %v1709
  %v1718 = vadd.f32 %v1678, %v1710
  %v1719 = vadd.f32 %v1679, %v1711
  %v1720 = vadd.f32 %v1680, %v1712
  %v1721 = vadd.f32 %v1681, %v1713
  %1722 = vrot.lane.b32.xlu0 %v1546, 127
  %v1723 = vpop.permute.xlu0 %1722
  %1724 = vrot.lane.b32.xlu0 %v1548, 127
  %v1725 = vpop.permute.xlu0 %1724
  %1726 = vrot.lane.b32.xlu0 %v1550, 127
  %v1727 = vpop.permute.xlu0 %1726
  %1728 = vrot.lane.b32.xlu0 %v1552, 127
  %v1729 = vpop.permute.xlu0 %1728
  %1730 = vrot.lane.b32.xlu0 %v1547, 127
  %v1731 = vpop.permute.xlu0 %1730
  %1732 = vrot.lane.b32.xlu0 %v1549, 127
  %v1733 = vpop.permute.xlu0 %1732
  %1734 = vrot.lane.b32.xlu0 %v1551, 127
  %v1735 = vpop.permute.xlu0 %1734
  %1736 = vrot.lane.b32.xlu0 %v1553, 127
  %v1737 = vpop.permute.xlu0 %1736
  %v1738 = vsel %vm678, %v1723, %v1731
  %v1739 = vsel %vm678, %v1725, %v1733
  %v1740 = vsel %vm678, %v1727, %v1735
  %v1741 = vsel %vm678, %v1729, %v1737
  %v1742 = vsel %vm678, %v1731, %v1723
  %v1743 = vsel %vm678, %v1733, %v1725
  %v1744 = vsel %vm678, %v1735, %v1727
  %v1745 = vsel %vm678, %v1737, %v1729
  %v1746 = vmul.f32 %v1738, %v1026
  %v1747 = vmul.f32 %v1742, %v1027
  %v1748 = vmul.f32 %v1739, %v1028
  %v1749 = vmul.f32 %v1743, %v1029
  %v1750 = vmul.f32 %v1740, %v1030
  %v1751 = vmul.f32 %v1744, %v1031
  %v1752 = vmul.f32 %v1741, %v1032
  %v1753 = vmul.f32 %v1745, %v1033
  %v1754 = vadd.f32 %v1714, %v1746
  %v1755 = vadd.f32 %v1715, %v1747
  %v1756 = vadd.f32 %v1716, %v1748
  %v1757 = vadd.f32 %v1717, %v1749
  %v1758 = vadd.f32 %v1718, %v1750
  %v1759 = vadd.f32 %v1719, %v1751
  %v1760 = vadd.f32 %v1720, %v1752
  %v1761 = vadd.f32 %v1721, %v1753
  %1762 = vrot.lane.b32.xlu0 %v1546, 113
  %v1763 = vpop.permute.xlu0 %1762
  %1764 = vrot.lane.b32.xlu0 %v1548, 113
  %v1765 = vpop.permute.xlu0 %1764
  %1766 = vrot.lane.b32.xlu0 %v1550, 113
  %v1767 = vpop.permute.xlu0 %1766
  %1768 = vrot.lane.b32.xlu0 %v1552, 113
  %v1769 = vpop.permute.xlu0 %1768
  %1770 = vrot.lane.b32.xlu0 %v1547, 113
  %v1771 = vpop.permute.xlu0 %1770
  %1772 = vrot.lane.b32.xlu0 %v1549, 113
  %v1773 = vpop.permute.xlu0 %1772
  %1774 = vrot.lane.b32.xlu0 %v1551, 113
  %v1775 = vpop.permute.xlu0 %1774
  %1776 = vrot.lane.b32.xlu0 %v1553, 113
  %v1777 = vpop.permute.xlu0 %1776
  %v1778 = vsel %vm719, %v1763, %v1771
  %v1779 = vsel %vm719, %v1765, %v1773
  %v1780 = vsel %vm719, %v1767, %v1775
  %v1781 = vsel %vm719, %v1769, %v1777
  %v1782 = vsel %vm719, %v1771, %v1763
  %v1783 = vsel %vm719, %v1773, %v1765
  %v1784 = vsel %vm719, %v1775, %v1767
  %v1785 = vsel %vm719, %v1777, %v1769
  %v1786 = vmul.f32 %v1778, %v1050
  %v1787 = vmul.f32 %v1782, %v1051
  %v1788 = vmul.f32 %v1779, %v1052
  %v1789 = vmul.f32 %v1783, %v1053
  %v1790 = vmul.f32 %v1780, %v1054
  %v1791 = vmul.f32 %v1784, %v1055
  %v1792 = vmul.f32 %v1781, %v1056
  %v1793 = vmul.f32 %v1785, %v1057
  %v1794 = vadd.f32 %v1754, %v1786
  %v1795 = vadd.f32 %v1755, %v1787
  %v1796 = vadd.f32 %v1756, %v1788
  %v1797 = vadd.f32 %v1757, %v1789
  %v1798 = vadd.f32 %v1758, %v1790
  %v1799 = vadd.f32 %v1759, %v1791
  %v1800 = vadd.f32 %v1760, %v1792
  %v1801 = vadd.f32 %v1761, %v1793
  %1802 = vrot.lane.b32.xlu0 %v1546, 112
  %v1803 = vpop.permute.xlu0 %1802
  %1804 = vrot.lane.b32.xlu0 %v1548, 112
  %v1805 = vpop.permute.xlu0 %1804
  %1806 = vrot.lane.b32.xlu0 %v1550, 112
  %v1807 = vpop.permute.xlu0 %1806
  %1808 = vrot.lane.b32.xlu0 %v1552, 112
  %v1809 = vpop.permute.xlu0 %1808
  %1810 = vrot.lane.b32.xlu0 %v1547, 112
  %v1811 = vpop.permute.xlu0 %1810
  %1812 = vrot.lane.b32.xlu0 %v1549, 112
  %v1813 = vpop.permute.xlu0 %1812
  %1814 = vrot.lane.b32.xlu0 %v1551, 112
  %v1815 = vpop.permute.xlu0 %1814
  %1816 = vrot.lane.b32.xlu0 %v1553, 112
  %v1817 = vpop.permute.xlu0 %1816
  %v1818 = vsel %vm760, %v1803, %v1811
  %v1819 = vsel %vm760, %v1805, %v1813
  %v1820 = vsel %vm760, %v1807, %v1815
  %v1821 = vsel %vm760, %v1809, %v1817
  %v1822 = vsel %vm760, %v1811, %v1803
  %v1823 = vsel %vm760, %v1813, %v1805
  %v1824 = vsel %vm760, %v1815, %v1807
  %v1825 = vsel %vm760, %v1817, %v1809
  %v1826 = vmul.f32 %v1818, %v1074
  %v1827 = vmul.f32 %v1822, %v1075
  %v1828 = vmul.f32 %v1819, %v1076
  %v1829 = vmul.f32 %v1823, %v1077
  %v1830 = vmul.f32 %v1820, %v1078
  %v1831 = vmul.f32 %v1824, %v1079
  %v1832 = vmul.f32 %v1821, %v1080
  %v1833 = vmul.f32 %v1825, %v1081
  %v1834 = vadd.f32 %v1794, %v1826
  %v1835 = vadd.f32 %v1795, %v1827
  %v1836 = vadd.f32 %v1796, %v1828
  %v1837 = vadd.f32 %v1797, %v1829
  %v1838 = vadd.f32 %v1798, %v1830
  %v1839 = vadd.f32 %v1799, %v1831
  %v1840 = vadd.f32 %v1800, %v1832
  %v1841 = vadd.f32 %v1801, %v1833
  %1842 = vrot.lane.b32.xlu0 %v1546, 111
  %v1843 = vpop.permute.xlu0 %1842
  %1844 = vrot.lane.b32.xlu0 %v1548, 111
  %v1845 = vpop.permute.xlu0 %1844
  %1846 = vrot.lane.b32.xlu0 %v1550, 111
  %v1847 = vpop.permute.xlu0 %1846
  %1848 = vrot.lane.b32.xlu0 %v1552, 111
  %v1849 = vpop.permute.xlu0 %1848
  %1850 = vrot.lane.b32.xlu0 %v1547, 111
  %v1851 = vpop.permute.xlu0 %1850
  %1852 = vrot.lane.b32.xlu0 %v1549, 111
  %v1853 = vpop.permute.xlu0 %1852
  %1854 = vrot.lane.b32.xlu0 %v1551, 111
  %v1855 = vpop.permute.xlu0 %1854
  %1856 = vrot.lane.b32.xlu0 %v1553, 111
  %v1857 = vpop.permute.xlu0 %1856
  %v1858 = vsel %vm801, %v1843, %v1851
  %v1859 = vsel %vm801, %v1845, %v1853
  %v1860 = vsel %vm801, %v1847, %v1855
  %v1861 = vsel %vm801, %v1849, %v1857
  %v1862 = vsel %vm801, %v1851, %v1843
  %v1863 = vsel %vm801, %v1853, %v1845
  %v1864 = vsel %vm801, %v1855, %v1847
  %v1865 = vsel %vm801, %v1857, %v1849
  %v1866 = vmul.f32 %v1858, %v1098
  %v1867 = vmul.f32 %v1862, %v1099
  %v1868 = vmul.f32 %v1859, %v1100
  %v1869 = vmul.f32 %v1863, %v1101
  %v1870 = vmul.f32 %v1860, %v1102
  %v1871 = vmul.f32 %v1864, %v1103
  %v1872 = vmul.f32 %v1861, %v1104
  %v1873 = vmul.f32 %v1865, %v1105
  %v1874 = vadd.f32 %v1834, %v1866
  %v1875 = vadd.f32 %v1835, %v1867
  %v1876 = vadd.f32 %v1836, %v1868
  %v1877 = vadd.f32 %v1837, %v1869
  %v1878 = vadd.f32 %v1838, %v1870
  %v1879 = vadd.f32 %v1839, %v1871
  %v1880 = vadd.f32 %v1840, %v1872
  %v1881 = vadd.f32 %v1841, %v1873
  %1882 = vset.pattern.permute.xlu0 30
  %1883 = vperm.xlu0 %1882, %v16
  %v1884 = vpop.permute.xlu0 %1883
  %1886 = vset.pattern.permute.xlu0 30
  %1887 = vperm.xlu0 %1886, %v17
  %v1888 = vpop.permute.xlu0 %1887
  %1890 = vset.pattern.permute.xlu0 30
  %1891 = vperm.xlu0 %1890, %v18
  %v1892 = vpop.permute.xlu0 %1891
  %1894 = vset.pattern.permute.xlu0 30
  %1895 = vperm.xlu0 %1894, %v19
  %v1896 = vpop.permute.xlu0 %1895
  %v1898 = vmul.f32 %v1874, %v1884
  %v1899 = vmul.f32 %v1875, %v1884
  %v1900 = vmul.f32 %v1876, %v1888
  %v1901 = vmul.f32 %v1877, %v1888
  %v1902 = vmul.f32 %v1878, %v1892
  %v1903 = vmul.f32 %v1879, %v1892
  %v1904 = vmul.f32 %v1880, %v1896
  %v1905 = vmul.f32 %v1881, %v1896
  %1906 = vset.pattern.permute.xlu0 31
  %1907 = vperm.xlu0 %1906, %v16
  %v1908 = vpop.permute.xlu0 %1907
  %1910 = vset.pattern.permute.xlu0 31
  %1911 = vperm.xlu0 %1910, %v17
  %v1912 = vpop.permute.xlu0 %1911
  %1914 = vset.pattern.permute.xlu0 31
  %1915 = vperm.xlu0 %1914, %v18
  %v1916 = vpop.permute.xlu0 %1915
  %1918 = vset.pattern.permute.xlu0 31
  %1919 = vperm.xlu0 %1918, %v19
  %v1920 = vpop.permute.xlu0 %1919
  %v1922 = vadd.f32 %v1898, %v1908
  %v1923 = vadd.f32 %v1899, %v1908
  %v1924 = vadd.f32 %v1900, %v1912
  %v1925 = vadd.f32 %v1901, %v1912
  %v1926 = vadd.f32 %v1902, %v1916
  %v1927 = vadd.f32 %v1903, %v1916
  %v1928 = vadd.f32 %v1904, %v1920
  %v1929 = vadd.f32 %v1905, %v1920
  %v1930 = vadd.f32 %v1506, %v1922
  %v1931 = vadd.f32 %v1507, %v1923
  %v1932 = vadd.f32 %v1508, %v1924
  %v1933 = vadd.f32 %v1509, %v1925
  %v1934 = vadd.f32 %v1510, %v1926
  %v1935 = vadd.f32 %v1511, %v1927
  %v1936 = vadd.f32 %v1512, %v1928
  %v1937 = vadd.f32 %v1513, %v1929
  %v1938 = vadd.f32 %v1930, %v1931
  %1939 = vadd.xlane.f32.xlu0 %v1938
  %v1940 = vpop.xlane.xlu0 %1939
  %v1941 = vadd.f32 %v1932, %v1933
  %1942 = vadd.xlane.f32.xlu0 %v1941
  %v1943 = vpop.xlane.xlu0 %1942
  %v1944 = vadd.f32 %v1934, %v1935
  %1945 = vadd.xlane.f32.xlu0 %v1944
  %v1946 = vpop.xlane.xlu0 %1945
  %v1947 = vadd.f32 %v1936, %v1937
  %1948 = vadd.xlane.f32.xlu0 %v1947
  %v1949 = vpop.xlane.xlu0 %1948
  %v1950 = vmul.f32 %v1940, 0.00390625
  %v1951 = vmul.f32 %v1943, 0.00390625
  %v1952 = vmul.f32 %v1946, 0.00390625
  %v1953 = vmul.f32 %v1949, 0.00390625
  %v1954 = vmul.f32 %v16, %v1950
  %v1955 = vmul.f32 %v17, %v1951
  %v1956 = vmul.f32 %v18, %v1952
  %v1957 = vmul.f32 %v19, %v1953
  %vm1958 = vcmask 302344
  %v1959 = vsel %vm1958, %v1954, 0.0
  %v1960 = vsel %vm1958, %v1955, 0.0
  %v1961 = vadd.f32 %v1959, %v1960
  %v1962 = vrot.slane %v1961, 4
  %v1963 = vadd.f32 %v1961, %v1962
  %v1964 = vrot.slane %v1963, 2
  %v1965 = vadd.f32 %v1963, %v1964
  %v1966 = vrot.slane %v1965, 1
  %v1967 = vadd.f32 %v1965, %v1966
  %v1969 = vrot.slane %v23, 1
  %1970 = vrot.lane.b32.xlu0 %v1969, 33
  %v1971 = vpop.permute.xlu0 %1970
  %v1973 = vadd.f32 %v1967, %v1971
  %v1974 = vmax.f32 %v1973, 0.0
  %v1975 = vlaneseq
  %v1976 = vshrl.u32 %v1975, 7
  %v1977 = vsub.s32 0, %v1976
  %v1978 = vrot.slane %v1974, %v1977
  %1980 = vrot.lane.b32.xlu0 %v1978, 4
  %v1981 = vpop.permute.xlu0 %1980
  %v1983 = vmul.f32 %v16, %v1981
  %v1984 = vmul.f32 %v17, %v1981
  %1987 = vrot.lane.b32.xlu0 %v1983, 91
  %v1988 = vpop.permute.xlu0 %1987
  %1989 = vrot.lane.b32.xlu0 %v1984, 91
  %v1990 = vpop.permute.xlu0 %1989
  %vm1993 = vcmask 31744
  %v1994 = vsel %vm1993, %v1988, 0.0
  %1995 = vadd.xlane.f32.xlu0 %v1994
  %v1996 = vpop.xlane.xlu0 %1995
  %v1997 = vsel %vm1993, %v1990, 0.0
  %1998 = vadd.xlane.f32.xlu0 %v1997
  %v1999 = vpop.xlane.xlu0 %1998
  %v2000 = vadd.f32 %v1996, %v16
  %v2001 = vadd.f32 %v1999, %v17
  %v2002 = vadd.f32 %v2000, 3.0
  %v2003 = vadd.f32 %v2001, 3.0
  %v2004 = vmax.f32 %v2002, 0.0
  %v2005 = vmax.f32 %v2003, 0.0
  %v2006 = vmin.f32 %v2004, 6.0
  %v2007 = vmin.f32 %v2005, 6.0
  %v2008 = vmul.f32 %v2006, %v199
  %v2009 = vmul.f32 %v2007, %v199
  %v2010 = vsel %vm1958, %v1956, 0.0
  %v2011 = vsel %vm1958, %v1957, 0.0
  %v2012 = vadd.f32 %v2010, %v2011
  %v2013 = vrot.slane %v2012, 4
  %v2014 = vadd.f32 %v2012, %v2013
  %v2015 = vrot.slane %v2014, 2
  %v2016 = vadd.f32 %v2014, %v2015
  %v2017 = vrot.slane %v2016, 1
  %v2018 = vadd.f32 %v2016, %v2017
  %v2019 = vadd.f32 %v2018, %v1971
  %v2020 = vmax.f32 %v2019, 0.0
  %v2021 = vlaneseq
  %v2022 = vshrl.u32 %v2021, 7
  %v2023 = vsub.s32 0, %v2022
  %v2024 = vrot.slane %v2020, %v2023
  %2026 = vrot.lane.b32.xlu0 %v2024, 4
  %v2027 = vpop.permute.xlu0 %2026
  %v2029 = vmul.f32 %v18, %v2027
  %v2030 = vmul.f32 %v19, %v2027
  %2033 = vrot.lane.b32.xlu0 %v2029, 91
  %v2034 = vpop.permute.xlu0 %2033
  %2035 = vrot.lane.b32.xlu0 %v2030, 91
  %v2036 = vpop.permute.xlu0 %2035
  %v2039 = vsel %vm1993, %v2034, 0.0
  %2040 = vadd.xlane.f32.xlu0 %v2039
  %v2041 = vpop.xlane.xlu0 %2040
  %v2042 = vsel %vm1993, %v2036, 0.0
  %2043 = vadd.xlane.f32.xlu0 %v2042
  %v2044 = vpop.xlane.xlu0 %2043
  %v2045 = vadd.f32 %v2041, %v18
  %v2046 = vadd.f32 %v2044, %v19
  %v2047 = vadd.f32 %v2045, 3.0
  %v2048 = vadd.f32 %v2046, 3.0
  %v2049 = vmax.f32 %v2047, 0.0
  %v2050 = vmax.f32 %v2048, 0.0
  %v2051 = vmin.f32 %v2049, 6.0
  %v2052 = vmin.f32 %v2050, 6.0
  %v2053 = vmul.f32 %v2051, %v199
  %v2054 = vmul.f32 %v2052, %v199
  %2056 = vset.pattern.permute.xlu0 32
  %2057 = vperm.xlu0 %2056, %v2008
  %v2058 = vpop.permute.xlu0 %2057
  %2061 = vset.pattern.permute.xlu0 32
  %2062 = vperm.xlu0 %2061, %v2009
  %v2063 = vpop.permute.xlu0 %2062
  %2066 = vset.pattern.permute.xlu0 32
  %2067 = vperm.xlu0 %2066, %v2053
  %v2068 = vpop.permute.xlu0 %2067
  %2071 = vset.pattern.permute.xlu0 32
  %2072 = vperm.xlu0 %2071, %v2054
  %v2073 = vpop.permute.xlu0 %2072
  %v2075 = vmul.f32 %v1930, %v2058
  %v2076 = vmul.f32 %v1931, %v2058
  %v2077 = vmul.f32 %v1932, %v2063
  %v2078 = vmul.f32 %v1933, %v2063
  %v2079 = vmul.f32 %v1934, %v2068
  %v2080 = vmul.f32 %v1935, %v2068
  %v2081 = vmul.f32 %v1936, %v2073
  %v2082 = vmul.f32 %v1937, %v2073
  %vm2083 = vcmask 261120
  %v2085 = vsel %vm2083, %v20, 0
  %2087 = vmatprep.subr.mxu0 0.0
  %2088 = vmatpush1.msra.mxu0 0.0
  %2089 = vmatprep.subr.mxu0 0.0
  %2090 = vmatpush1.msra.mxu0 0.0
  %2091 = vmatprep.subr.mxu0 0.0
  %2092 = vmatpush1.msra.mxu0 0.0
  %2093 = vmatprep.subr.mxu0 0.0
  %2094 = vmatpush1.msra.mxu0 0.0
  %2095 = vmatprep.subr.mxu0 0.0
  %2096 = vmatpush1.msra.mxu0 0.0
  %2097 = vmatprep.subr.mxu0 0.0
  %2098 = vmatpush1.msra.mxu0 0.0
  %2099 = vmatprep.subr.mxu0 0.0
  %2100 = vmatpush1.msra.mxu0 0.0
  %2101 = vmatprep.subr.mxu0 0.0
  %2102 = vmatpush1.msra.mxu0 0.0
  %2103 = vmatprep.subr.mxu0 0.0
  %2104 = vmatpush1.msra.mxu0 0.0
  %2105 = vmatprep.subr.mxu0 0.0
  %2106 = vmatpush1.msra.mxu0 0.0
  %2107 = vmatprep.subr.mxu0 0.0
  %2108 = vmatpush1.msra.mxu0 0.0
  %2109 = vmatprep.subr.mxu0 0.0
  %2110 = vmatpush1.msra.mxu0 0.0
  %2111 = vmatprep.subr.mxu0 %v2082
  %2112 = vmatpush1.msra.mxu0 %v2081
  %2113 = vmatprep.subr.mxu0 %v2080
  %2114 = vmatpush1.msra.mxu0 %v2079
  %2115 = vmatprep.subr.mxu0 %v2078
  %2116 = vmatpush1.msra.mxu0 %v2077
  %2117 = vmatprep.subr.mxu0 %v2076
  %2118 = vmatpush1.msra.mxu0 %v2075
  %2119 = vmatprep.subr.mxu0 0.0
  %2120 = vmatpush2.msra.mxu0 0.0
  %2121 = vmatprep.subr.mxu0 0.0
  %2122 = vmatpush2.msra.mxu0 0.0
  %2123 = vmatprep.subr.mxu0 0.0
  %2124 = vmatpush2.msra.mxu0 0.0
  %2125 = vmatprep.subr.mxu0 0.0
  %2126 = vmatpush2.msra.mxu0 0.0
  %2127 = vmatprep.subr.mxu0 0.0
  %2128 = vmatpush2.msra.mxu0 0.0
  %2129 = vmatprep.subr.mxu0 0.0
  %2130 = vmatpush2.msra.mxu0 0.0
  %2131 = vmatprep.subr.mxu0 0.0
  %2132 = vmatpush2.msra.mxu0 0.0
  %2133 = vmatprep.subr.mxu0 0.0
  %2134 = vmatpush2.msra.mxu0 0.0
  %2135 = vmatprep.subr.mxu0 0.0
  %2136 = vmatpush2.msra.mxu0 0.0
  %2137 = vmatprep.subr.mxu0 0.0
  %2138 = vmatpush2.msra.mxu0 0.0
  %2139 = vmatprep.subr.mxu0 0.0
  %2140 = vmatpush2.msra.mxu0 0.0
  %2141 = vmatprep.subr.mxu0 0.0
  %2142 = vmatpush2.msra.mxu0 0.0
  %2143 = vmatprep.subr.mxu0 0.0
  %2144 = vmatpush2.msra.mxu0 0.0
  %2145 = vmatprep.subr.mxu0 0.0
  %2146 = vmatpush2.msra.mxu0 0.0
  %2147 = vmatprep.subr.mxu0 0.0
  %2148 = vmatpush2.msra.mxu0 0.0
  %2149 = vmatprep.subr.mxu0 0.0
  %2150 = vmatpush2.msra.mxu0 0.0
  %2151 = vmatprep.mubr.f32.mxu0 0.0
  %2152 = vmatmul.mubr.f32.gmra.mxu0 %v2085
  %v2153 = vpop.f32.mrf.mxu0
  %v2154 = vadd.f32 0.0, %v2153
  %v2155 = vpop.f32.mrf.mxu0
  %v2156 = vadd.f32 0.0, %v2155
  %2157 = vdwg.mxu0
  %2158 = vset.pattern.permute.xlu0 32
  %2159 = vperm.xlu0 %2158, %v20
  %v2160 = vpop.permute.xlu0 %2159
  %v2162 = vmul.f32 %v2154, %v2160
  %v2163 = vmul.f32 %v2156, %v2160
  %v2164 = vadd.f32 %v14, %v2162
  %v2165 = vadd.f32 %v15, %v2163
  %2166 = vset.pattern.permute.xlu0 33
  %2167 = vperm.xlu0 %2166, %v20
  %v2168 = vpop.permute.xlu0 %2167
  %v2170 = vadd.f32 %v2164, %v2168
  %v2171 = vadd.f32 %v2165, %v2168
  %2172 = vst [vmem:[%s3] sm:$0xff] %v2170
  %2173 = vst [vmem:[%s3 + $0x8] sm:$0xff] %v2171
  // Predicated region
  $region14: #{locality_feed_forward.1} parent=0 // pred_check
    _
  $region15: #{locality_feed_forward.1} parent=0 // pred_check_branch
    %2175 = sbr.rel (0) target = $region17
  $region16: #{locality_feed_forward.1} parent=0 // pred_region
    _
  $region17: #{locality_feed_forward.1} parent=0 // pred_fallthru
    _
  // Predicated region
  $region18: #{locality_feed_forward.1} parent=0 // pred_check
    _
  $region19: #{locality_feed_forward.1} parent=0 // pred_check_branch
    %2177 = sbr.rel (0) target = $region21
  $region20: #{locality_feed_forward.1} parent=0 // pred_region
    _
  $region21: #{locality_feed_forward.1} parent=0 // pred_fallthru
    _

</llo_original>
